<compile_context>
chip_gen: v5e
topology: v5e:2x2
jax: 0.10.0
libtpu: 0.0.40
codegen_flags: <defaults>
</compile_context>

<pallas_src>
import math
from functools import partial

import jax
import jax.numpy as jnp
import numpy as np
from jax.experimental import pallas as pl
from jax.experimental.pallas import tpu as pltpu


def _mha_kernel(xq_ref, xk_ref, xv_ref,
                wq_ref, wk_ref, wv_ref,
                bq_ref, bk_ref, bv_ref,
                o_ref, q_sc, *, heads, scale):
    """One (batch, kv-tile) grid step.

    xq_ref        : (1, L, C)  bf16  full query tokens (resident across kv axis)
    xk_ref/xv_ref : (1, Tk, C) bf16  current key/value token tile
    w*_ref        : (C, C)     bf16  pre-transposed weights (y = x @ w)
    b*_ref        : (1, C)     f32
    o_ref         : (1, L, C)  f32   output block (resident across kv axis,
                                     accumulated into directly)
    q_sc          : (L, C)     bf16  scratch: scaled Q projection (per batch)
    """
    kv = pl.program_id(1)
    L, C = q_sc.shape
    dk = C // heads

    @pl.when(kv == 0)
    def _():
        # Q projection + 1/sqrt(d_k) scale, hoisted out of the KV-tile loop.
        q = jnp.dot(xq_ref[0], wq_ref[...],
                    preferred_element_type=jnp.float32) + bq_ref[0]
        q_sc[...] = (q * scale).astype(jnp.bfloat16)
        # Output block is VMEM-resident across the kv axis: zero once, then
        # accumulate straight into it (no separate accumulator scratch).
        o_ref[...] = jnp.zeros(o_ref.shape, o_ref.dtype)

    # K / V projections for this key tile (bf16 on the MXU, f32 accumulate).
    k = (jnp.dot(xk_ref[0], wk_ref[...], preferred_element_type=jnp.float32)
         + bk_ref[0]).astype(jnp.bfloat16)
    v = (jnp.dot(xv_ref[0], wv_ref[...], preferred_element_type=jnp.float32)
         + bv_ref[0]).astype(jnp.bfloat16)

    # Static unrolled loop over heads: lane-aligned d_k-wide column slices and
    # plain 2-D MXU matmuls -- no head-axis-in-the-middle reshape / relayout.
    # (d_k = 128 in the demo keeps every slice and store lane-aligned.)
    for h in range(heads):
        cols = slice(h * dk, (h + 1) * dk)
        q_h = q_sc[:, cols]                       # (L,  dk) bf16, pre-scaled
        k_h = k[:, cols]                          # (Tk, dk) bf16
        v_h = v[:, cols]                          # (Tk, dk) bf16

        # scores (L, Tk): contract on dk; "NT" dot_general, no explicit transpose.
        s = jax.lax.dot_general(q_h, k_h, (((1,), (1,)), ((), ())),
                                preferred_element_type=jnp.float32)

        # nn.Softmax(dim=1): normalise over the *query* axis (axis 0 here).
        # Each key column is normalised independently, so KV tiling needs no
        # cross-tile online-softmax rescaling.
        s = s - jnp.max(s, axis=0, keepdims=True)
        e = jnp.exp(s)                                                # f32 VPU/EUP
        p = e * pl.reciprocal(jnp.sum(e, axis=0, keepdims=True), approx=True)
        # TODO(synk): nn.Dropout(p=0.1) on the attention weights is identity at
        # inference; a training variant would use pltpu.prng_seed/prng_random_bits.

        # (L, Tk) @ (Tk, dk) -> this kv tile's partial output; accumulate
        # straight into the resident f32 output block (lane-aligned columns).
        o_ref[0, :, cols] += jnp.dot(p.astype(jnp.bfloat16), v_h,
                                     preferred_element_type=jnp.float32)


def multi_head_attention_pallas(q, k, v, params, heads, *, kv_block=512):
    """q, k, v: (B, C, L) float32 channel-major, like the PyTorch module."""
    B, C, L = q.shape
    assert C % heads == 0, "in_channels must be divisible by heads"
    d_k = C // heads
    kv_blk = min(kv_block, L)
    assert L % kv_blk == 0, "sequence length must be divisible by the kv tile"
    n_kv = L // kv_blk

    # Token-major bf16 activations (lane axis = C); weights pre-transposed so
    # the in-kernel projection is a plain `x @ w` contraction over C.  Pre-cast
    # to bf16 halves HBM->VMEM DMA bytes.  The boundary transposes are forced
    # by the module's (B, C, L) interface; a token-major caller could drop them.
    to_tok = lambda x: jnp.transpose(x, (0, 2, 1)).astype(jnp.bfloat16)
    qt, kt, vt = to_tok(q), to_tok(k), to_tok(v)
    wqT = params["wq"].T.astype(jnp.bfloat16)
    wkT = params["wk"].T.astype(jnp.bfloat16)
    wvT = params["wv"].T.astype(jnp.bfloat16)
    bq = params["bq"].reshape(1, C).astype(jnp.float32)
    bk = params["bk"].reshape(1, C).astype(jnp.float32)
    bv = params["bv"].reshape(1, C).astype(jnp.float32)

    const2 = lambda shape: pl.BlockSpec(shape, lambda b, s: (0, 0))

    # Explicit scoped-VMEM budget: pipeline double-buffers every block, plus
    # the Q scratch and the live per-head score intermediates.
    bf16, f32 = 2, 4
    block_bytes = (
        2 * L * C * bf16              # Q token block (double-buffered)
        + 2 * L * C * f32             # resident output block
        + 2 * 2 * kv_blk * C * bf16   # K and V tiles
        + 2 * 3 * C * C * bf16        # wq / wk / wv
        + 2 * 3 * C * f32             # biases
    )
    scratch_bytes = L * C * bf16      # q_sc
    live_bytes = (
        3 * L * kv_blk * f32          # s / e / p for one head
        + 2 * kv_blk * C * f32        # K / V projection temporaries
        + L * C * f32                 # Q projection temporary
    )
    vmem_limit = int(1.5 * (block_bytes + scratch_bytes + live_bytes)) + (2 << 20)
    vmem_limit = max(vmem_limit, 32 * 1024 * 1024)    # never below the default
    vmem_limit = min(vmem_limit, 128 * 1024 * 1024)   # never above physical

    out_tok = pl.pallas_call(
        partial(_mha_kernel, heads=heads, scale=1.0 / math.sqrt(d_k)),
        grid=(B, n_kv),
        in_specs=[
            pl.BlockSpec((1, L, C), lambda b, s: (b, 0, 0)),       # q tokens
            pl.BlockSpec((1, kv_blk, C), lambda b, s: (b, s, 0)),  # k tile
            pl.BlockSpec((1, kv_blk, C), lambda b, s: (b, s, 0)),  # v tile
            const2((C, C)), const2((C, C)), const2((C, C)),        # wq, wk, wv
            const2((1, C)), const2((1, C)), const2((1, C)),        # bq, bk, bv
        ],
        out_specs=pl.BlockSpec((1, L, C), lambda b, s: (b, 0, 0)),
        out_shape=jax.ShapeDtypeStruct((B, L, C), jnp.float32),
        scratch_shapes=[
            pltpu.VMEM((L, C), jnp.bfloat16),   # scaled Q projection
        ],
        compiler_params=pltpu.CompilerParams(
            # Batch axis 'parallel' (feeds both v7x TensorCores when B >= 2);
            # the kv axis must stay 'arbitrary' and innermost because q_sc and
            # the resident o_ref carry state across it.
            dimension_semantics=("parallel", "arbitrary"),
            vmem_limit_bytes=vmem_limit),
    )(qt, kt, vt, wqT, wkT, wvT, bq, bk, bv)

    return jnp.transpose(out_tok, (0, 2, 1))    # back to (B, C, L)


def _ref_mha(q, k, v, params, heads):
    """Plain-JAX f32 replica of the PyTorch use_conv=True forward."""
    b, c, l = q.shape
    d_k = c // heads

    def proj(x, w, bias):                       # 1x1 Conv1d, weight (out, in)
        return jnp.einsum('oc,bcl->bol', w, x) + bias[None, :, None]

    qp = proj(q, params["wq"], params["bq"]).reshape(b * heads, d_k, l)
    kp = proj(k, params["wk"], params["bk"]).reshape(b * heads, d_k, l)
    vp = proj(v, params["wv"], params["bv"]).reshape(b * heads, d_k, l)
    s = jnp.einsum('bct,bcs->bts', qp, kp) * (1.0 / math.sqrt(d_k))
    p = jax.nn.softmax(s, axis=1)               # nn.Softmax(dim=1) == query axis
    o = jnp.einsum('bts,bcs->bct', p, vp)
    return o.reshape(b, c, l)


def make_params(key, in_channels):
    C = in_channels
    ks = jax.random.split(key, 6)
    w_std = 0.5 / math.sqrt(C)
    return {
        "wq": w_std * jax.random.normal(ks[0], (C, C), jnp.float32),
        "wk": w_std * jax.random.normal(ks[1], (C, C), jnp.float32),
        "wv": w_std * jax.random.normal(ks[2], (C, C), jnp.float32),
        "bq": 0.1 * jax.random.normal(ks[3], (C,), jnp.float32),
        "bk": 0.1 * jax.random.normal(ks[4], (C,), jnp.float32),
        "bv": 0.1 * jax.random.normal(ks[5], (C,), jnp.float32),
    }


if __name__ == "__main__":
    # Small but TPU-friendly shapes: d_k = 128 (lane-aligned head dim).
    B, C, L, HEADS = 2, 256, 128, 2
    key = jax.random.PRNGKey(0)
    kq, kk, kv_, kp = jax.random.split(key, 4)
    q = jax.random.normal(kq, (B, C, L), jnp.float32)
    k = jax.random.normal(kk, (B, C, L), jnp.float32)
    v = jax.random.normal(kv_, (B, C, L), jnp.float32)
    params = make_params(kp, C)

    out = multi_head_attention_pallas(q, k, v, params, HEADS)
    out = jax.block_until_ready(out)
    assert out.shape == (B, C, L)

    # Correctness vs. f32 plain-JAX reference (loose tol: bf16 MXU operands).
    ref = _ref_mha(q, k, v, params, HEADS)
    np.testing.assert_allclose(np.asarray(out), np.asarray(ref),
                               rtol=2e-2, atol=2e-2)
    print("KERNEL_OK")
</pallas_src>

<mosaic_0001>
module attributes {stable_mosaic.version = 11 : i64} {
  func.func @_mha_kernel(%arg0: i32, %arg1: i32, %arg2: memref<1x128x256xbf16, #tpu.memory_space<vmem>>, %arg3: memref<1x128x256xbf16, #tpu.memory_space<vmem>>, %arg4: memref<1x128x256xbf16, #tpu.memory_space<vmem>>, %arg5: memref<256x256xbf16, #tpu.memory_space<vmem>>, %arg6: memref<256x256xbf16, #tpu.memory_space<vmem>>, %arg7: memref<256x256xbf16, #tpu.memory_space<vmem>>, %arg8: memref<1x256xf32, #tpu.memory_space<vmem>>, %arg9: memref<1x256xf32, #tpu.memory_space<vmem>>, %arg10: memref<1x256xf32, #tpu.memory_space<vmem>>, %arg11: memref<1x128x256xf32, #tpu.memory_space<vmem>>, %arg12: memref<128x256xbf16, #tpu.memory_space<vmem>>) attributes {dimension_semantics = [#tpu.dimension_semantics<parallel>, #tpu.dimension_semantics<arbitrary>], iteration_bounds = array<i64: 2, 1>, scalar_prefetch = 0 : i64, scratch_operands = 1 : i64, tpu.core_type = #tpu.core_type<tc>, window_params = [{transform_indices = @transform_0, window_bounds = array<i64: 1, 128, 256>}, {transform_indices = @transform_1, window_bounds = array<i64: 1, 128, 256>}, {transform_indices = @transform_2, window_bounds = array<i64: 1, 128, 256>}, {pipeline_mode = #tpu.pipeline_mode<synchronous>, transform_indices = @transform_3, window_bounds = array<i64: 256, 256>}, {pipeline_mode = #tpu.pipeline_mode<synchronous>, transform_indices = @transform_4, window_bounds = array<i64: 256, 256>}, {pipeline_mode = #tpu.pipeline_mode<synchronous>, transform_indices = @transform_5, window_bounds = array<i64: 256, 256>}, {pipeline_mode = #tpu.pipeline_mode<synchronous>, transform_indices = @transform_6, window_bounds = array<i64: 1, 256>}, {pipeline_mode = #tpu.pipeline_mode<synchronous>, transform_indices = @transform_7, window_bounds = array<i64: 1, 256>}, {pipeline_mode = #tpu.pipeline_mode<synchronous>, transform_indices = @transform_8, window_bounds = array<i64: 1, 256>}, {transform_indices = @transform_9, window_bounds = array<i64: 1, 128, 256>}]} {
    %c0_i32 = arith.constant 0 : i32
    %0 = arith.cmpi eq, %arg1, %c0_i32 : i32
    %1 = arith.extui %0 : i1 to i32
    %c0_i32_0 = arith.constant 0 : i32
    %2 = arith.cmpi ne, %1, %c0_i32_0 : i32
    scf.if %2 {
      %c0_38 = arith.constant 0 : index
      %c0_39 = arith.constant 0 : index
      %c0_40 = arith.constant 0 : index
      %67 = vector.load %arg2[%c0_38, %c0_39, %c0_40] : memref<1x128x256xbf16, #tpu.memory_space<vmem>>, vector<1x128x256xbf16>
      %68 = vector.shape_cast %67 : vector<1x128x256xbf16> to vector<128x256xbf16>
      %c0_41 = arith.constant 0 : index
      %c0_42 = arith.constant 0 : index
      %69 = vector.load %arg5[%c0_41, %c0_42] : memref<256x256xbf16, #tpu.memory_space<vmem>>, vector<256x256xbf16>
      %cst_43 = arith.constant dense<0.000000e+00> : vector<128x256xf32>
      %70 = tpu.matmul %68, %69, %cst_43 {dimension_numbers = #tpu.dot_dimension_numbers<[1], [0], [0], [1], [0, 0, 1, 1], [], []>} : vector<128x256xbf16>, vector<256x256xbf16>, vector<128x256xf32> -> vector<128x256xf32>
      %c0_44 = arith.constant 0 : index
      %c0_45 = arith.constant 0 : index
      %71 = vector.load %arg8[%c0_44, %c0_45] : memref<1x256xf32, #tpu.memory_space<vmem>>, vector<1x256xf32>
      %72 = vector.shape_cast %71 : vector<1x256xf32> to vector<256xf32>
      %73 = vector.shape_cast %72 : vector<256xf32> to vector<1x256xf32>
      %74 = vector.broadcast %73 : vector<1x256xf32> to vector<128x256xf32>
      %75 = arith.addf %70, %74 : vector<128x256xf32>
      %cst_46 = arith.constant 0.0883883461 : f32
      %76 = vector.broadcast %cst_46 : f32 to vector<128x256xf32>
      %77 = arith.mulf %75, %76 : vector<128x256xf32>
      %78 = arith.truncf %77 : vector<128x256xf32> to vector<128x256xbf16>
      %c0_47 = arith.constant 0 : index
      %c0_48 = arith.constant 0 : index
      %79 = vector.load %arg12[%c0_47, %c0_48] : memref<128x256xbf16, #tpu.memory_space<vmem>>, vector<128x256xbf16>
      tpu.vector_store %arg12[%c0_47, %c0_48], %78 {strides = array<i32>} : memref<128x256xbf16, #tpu.memory_space<vmem>>, vector<128x256xbf16>,
      %cst_49 = arith.constant 0.000000e+00 : f32
      %80 = vector.broadcast %cst_49 : f32 to vector<1x128x256xf32>
      %c0_50 = arith.constant 0 : index
      %c0_51 = arith.constant 0 : index
      %c0_52 = arith.constant 0 : index
      %81 = vector.load %arg11[%c0_50, %c0_51, %c0_52] : memref<1x128x256xf32, #tpu.memory_space<vmem>>, vector<1x128x256xf32>
      tpu.vector_store %arg11[%c0_50, %c0_51, %c0_52], %80 {strides = array<i32>} : memref<1x128x256xf32, #tpu.memory_space<vmem>>, vector<1x128x256xf32>,
    } else {
    }
    %c0 = arith.constant 0 : index
    %c0_1 = arith.constant 0 : index
    %c0_2 = arith.constant 0 : index
    %3 = vector.load %arg3[%c0, %c0_1, %c0_2] : memref<1x128x256xbf16, #tpu.memory_space<vmem>>, vector<1x128x256xbf16>
    %4 = vector.shape_cast %3 : vector<1x128x256xbf16> to vector<128x256xbf16>
    %c0_3 = arith.constant 0 : index
    %c0_4 = arith.constant 0 : index
    %5 = vector.load %arg6[%c0_3, %c0_4] : memref<256x256xbf16, #tpu.memory_space<vmem>>, vector<256x256xbf16>
    %cst = arith.constant dense<0.000000e+00> : vector<128x256xf32>
    %6 = tpu.matmul %4, %5, %cst {dimension_numbers = #tpu.dot_dimension_numbers<[1], [0], [0], [1], [0, 0, 1, 1], [], []>} : vector<128x256xbf16>, vector<256x256xbf16>, vector<128x256xf32> -> vector<128x256xf32>
    %c0_5 = arith.constant 0 : index
    %c0_6 = arith.constant 0 : index
    %7 = vector.load %arg9[%c0_5, %c0_6] : memref<1x256xf32, #tpu.memory_space<vmem>>, vector<1x256xf32>
    %8 = vector.shape_cast %7 : vector<1x256xf32> to vector<256xf32>
    %9 = vector.shape_cast %8 : vector<256xf32> to vector<1x256xf32>
    %10 = vector.broadcast %9 : vector<1x256xf32> to vector<128x256xf32>
    %11 = arith.addf %6, %10 : vector<128x256xf32>
    %12 = arith.truncf %11 : vector<128x256xf32> to vector<128x256xbf16>
    %c0_7 = arith.constant 0 : index
    %c0_8 = arith.constant 0 : index
    %c0_9 = arith.constant 0 : index
    %13 = vector.load %arg4[%c0_7, %c0_8, %c0_9] : memref<1x128x256xbf16, #tpu.memory_space<vmem>>, vector<1x128x256xbf16>
    %14 = vector.shape_cast %13 : vector<1x128x256xbf16> to vector<128x256xbf16>
    %c0_10 = arith.constant 0 : index
    %c0_11 = arith.constant 0 : index
    %15 = vector.load %arg7[%c0_10, %c0_11] : memref<256x256xbf16, #tpu.memory_space<vmem>>, vector<256x256xbf16>
    %cst_12 = arith.constant dense<0.000000e+00> : vector<128x256xf32>
    %16 = tpu.matmul %14, %15, %cst_12 {dimension_numbers = #tpu.dot_dimension_numbers<[1], [0], [0], [1], [0, 0, 1, 1], [], []>} : vector<128x256xbf16>, vector<256x256xbf16>, vector<128x256xf32> -> vector<128x256xf32>
    %c0_13 = arith.constant 0 : index
    %c0_14 = arith.constant 0 : index
    %17 = vector.load %arg10[%c0_13, %c0_14] : memref<1x256xf32, #tpu.memory_space<vmem>>, vector<1x256xf32>
    %18 = vector.shape_cast %17 : vector<1x256xf32> to vector<256xf32>
    %19 = vector.shape_cast %18 : vector<256xf32> to vector<1x256xf32>
    %20 = vector.broadcast %19 : vector<1x256xf32> to vector<128x256xf32>
    %21 = arith.addf %16, %20 : vector<128x256xf32>
    %22 = arith.truncf %21 : vector<128x256xf32> to vector<128x256xbf16>
    %c0_15 = arith.constant 0 : index
    %c0_16 = arith.constant 0 : index
    %23 = vector.load %arg12[%c0_15, %c0_16] : memref<128x256xbf16, #tpu.memory_space<vmem>>, vector<128x128xbf16>
    %24 = vector.extract_strided_slice %12 {offsets = [0, 0], sizes = [128, 128], strides = [1, 1]} : vector<128x256xbf16> to vector<128x128xbf16>
    %25 = vector.extract_strided_slice %22 {offsets = [0, 0], sizes = [128, 128], strides = [1, 1]} : vector<128x256xbf16> to vector<128x128xbf16>
    %cst_17 = arith.constant dense<0.000000e+00> : vector<128x128xf32>
    %26 = tpu.matmul %23, %24, %cst_17 {dimension_numbers = #tpu.dot_dimension_numbers<[1], [1], [0], [0], [0, 0, 1, 0], [], []>} : vector<128x128xbf16>, vector<128x128xbf16>, vector<128x128xf32> -> vector<128x128xf32>
    %cst_18 = arith.constant dense<0xFF800000> : vector<128xf32>
    %27 = vector.multi_reduction <maximumf>, %26, %cst_18 [0] : vector<128x128xf32> to vector<128xf32>
    %28 = vector.shape_cast %27 : vector<128xf32> to vector<1x128xf32>
    %29 = vector.broadcast %28 : vector<1x128xf32> to vector<128x128xf32>
    %30 = arith.subf %26, %29 : vector<128x128xf32>
    %31 = math.exp %30 : vector<128x128xf32>
    %cst_19 = arith.constant dense<0.000000e+00> : vector<128xf32>
    %32 = vector.multi_reduction <add>, %31, %cst_19 [0] : vector<128x128xf32> to vector<128xf32>
    %33 = vector.shape_cast %32 : vector<128xf32> to vector<1x128xf32>
    %34 = tpu.reciprocal %33 {approx = true} : vector<1x128xf32> -> vector<1x128xf32>
    %35 = vector.broadcast %34 : vector<1x128xf32> to vector<128x128xf32>
    %36 = arith.mulf %31, %35 : vector<128x128xf32>
    %c0_20 = arith.constant 0 : index
    %c0_21 = arith.constant 0 : index
    %c0_22 = arith.constant 0 : index
    %37 = vector.load %arg11[%c0_20, %c0_21, %c0_22] : memref<1x128x256xf32, #tpu.memory_space<vmem>>, vector<1x128x128xf32>
    %38 = vector.shape_cast %37 : vector<1x128x128xf32> to vector<128x128xf32>
    %39 = arith.truncf %36 : vector<128x128xf32> to vector<128x128xbf16>
    %cst_23 = arith.constant dense<0.000000e+00> : vector<128x128xf32>
    %40 = tpu.matmul %39, %25, %cst_23 {dimension_numbers = #tpu.dot_dimension_numbers<[1], [0], [0], [1], [0, 0, 1, 1], [], []>} : vector<128x128xbf16>, vector<128x128xbf16>, vector<128x128xf32> -> vector<128x128xf32>
    %41 = arith.addf %38, %40 : vector<128x128xf32>
    %c0_24 = arith.constant 0 : index
    %c0_25 = arith.constant 0 : index
    %c0_26 = arith.constant 0 : index
    %42 = vector.load %arg11[%c0_24, %c0_25, %c0_26] : memref<1x128x256xf32, #tpu.memory_space<vmem>>, vector<1x128x128xf32>
    %43 = vector.shape_cast %42 : vector<1x128x128xf32> to vector<128x128xf32>
    %44 = vector.shape_cast %41 : vector<128x128xf32> to vector<1x128x128xf32>
    tpu.vector_store %arg11[%c0_24, %c0_25, %c0_26], %44 {strides = array<i32>} : memref<1x128x256xf32, #tpu.memory_space<vmem>>, vector<1x128x128xf32>,
    %c0_27 = arith.constant 0 : index
    %c128 = arith.constant 128 : index
    %45 = vector.load %arg12[%c0_27, %c128] : memref<128x256xbf16, #tpu.memory_space<vmem>>, vector<128x128xbf16>
    %46 = vector.extract_strided_slice %12 {offsets = [0, 128], sizes = [128, 128], strides = [1, 1]} : vector<128x256xbf16> to vector<128x128xbf16>
    %47 = vector.extract_strided_slice %22 {offsets = [0, 128], sizes = [128, 128], strides = [1, 1]} : vector<128x256xbf16> to vector<128x128xbf16>
    %cst_28 = arith.constant dense<0.000000e+00> : vector<128x128xf32>
    %48 = tpu.matmul %45, %46, %cst_28 {dimension_numbers = #tpu.dot_dimension_numbers<[1], [1], [0], [0], [0, 0, 1, 0], [], []>} : vector<128x128xbf16>, vector<128x128xbf16>, vector<128x128xf32> -> vector<128x128xf32>
    %cst_29 = arith.constant dense<0xFF800000> : vector<128xf32>
    %49 = vector.multi_reduction <maximumf>, %48, %cst_29 [0] : vector<128x128xf32> to vector<128xf32>
    %50 = vector.shape_cast %49 : vector<128xf32> to vector<1x128xf32>
    %51 = vector.broadcast %50 : vector<1x128xf32> to vector<128x128xf32>
    %52 = arith.subf %48, %51 : vector<128x128xf32>
    %53 = math.exp %52 : vector<128x128xf32>
    %cst_30 = arith.constant dense<0.000000e+00> : vector<128xf32>
    %54 = vector.multi_reduction <add>, %53, %cst_30 [0] : vector<128x128xf32> to vector<128xf32>
    %55 = vector.shape_cast %54 : vector<128xf32> to vector<1x128xf32>
    %56 = tpu.reciprocal %55 {approx = true} : vector<1x128xf32> -> vector<1x128xf32>
    %57 = vector.broadcast %56 : vector<1x128xf32> to vector<128x128xf32>
    %58 = arith.mulf %53, %57 : vector<128x128xf32>
    %c0_31 = arith.constant 0 : index
    %c0_32 = arith.constant 0 : index
    %c128_33 = arith.constant 128 : index
    %59 = vector.load %arg11[%c0_31, %c0_32, %c128_33] : memref<1x128x256xf32, #tpu.memory_space<vmem>>, vector<1x128x128xf32>
    %60 = vector.shape_cast %59 : vector<1x128x128xf32> to vector<128x128xf32>
    %61 = arith.truncf %58 : vector<128x128xf32> to vector<128x128xbf16>
    %cst_34 = arith.constant dense<0.000000e+00> : vector<128x128xf32>
    %62 = tpu.matmul %61, %47, %cst_34 {dimension_numbers = #tpu.dot_dimension_numbers<[1], [0], [0], [1], [0, 0, 1, 1], [], []>} : vector<128x128xbf16>, vector<128x128xbf16>, vector<128x128xf32> -> vector<128x128xf32>
    %63 = arith.addf %60, %62 : vector<128x128xf32>
    %c0_35 = arith.constant 0 : index
    %c0_36 = arith.constant 0 : index
    %c128_37 = arith.constant 128 : index
    %64 = vector.load %arg11[%c0_35, %c0_36, %c128_37] : memref<1x128x256xf32, #tpu.memory_space<vmem>>, vector<1x128x128xf32>
    %65 = vector.shape_cast %64 : vector<1x128x128xf32> to vector<128x128xf32>
    %66 = vector.shape_cast %63 : vector<128x128xf32> to vector<1x128x128xf32>
    tpu.vector_store %arg11[%c0_35, %c0_36, %c128_37], %66 {strides = array<i32>} : memref<1x128x256xf32, #tpu.memory_space<vmem>>, vector<1x128x128xf32>,
    return
  }
  func.func @transform_0(%arg0: i32, %arg1: i32) -> (i32, i32, i32) {
    %c0_i32 = arith.constant 0 : i32
    %c0_i32_0 = arith.constant 0 : i32
    %c0_i32_1 = arith.constant 0 : i32
    return %arg0, %c0_i32, %c0_i32_0 : i32, i32, i32
  }
  func.func @transform_1(%arg0: i32, %arg1: i32) -> (i32, i32, i32) {
    %c0_i32 = arith.constant 0 : i32
    %c0_i32_0 = arith.constant 0 : i32
    return %arg0, %arg1, %c0_i32 : i32, i32, i32
  }
  func.func @transform_2(%arg0: i32, %arg1: i32) -> (i32, i32, i32) {
    %c0_i32 = arith.constant 0 : i32
    %c0_i32_0 = arith.constant 0 : i32
    return %arg0, %arg1, %c0_i32 : i32, i32, i32
  }
  func.func @transform_3(%arg0: i32, %arg1: i32) -> (i32, i32) {
    %c0_i32 = arith.constant 0 : i32
    %c0_i32_0 = arith.constant 0 : i32
    %c0_i32_1 = arith.constant 0 : i32
    return %c0_i32, %c0_i32_0 : i32, i32
  }
  func.func @transform_4(%arg0: i32, %arg1: i32) -> (i32, i32) {
    %c0_i32 = arith.constant 0 : i32
    %c0_i32_0 = arith.constant 0 : i32
    %c0_i32_1 = arith.constant 0 : i32
    return %c0_i32, %c0_i32_0 : i32, i32
  }
  func.func @transform_5(%arg0: i32, %arg1: i32) -> (i32, i32) {
    %c0_i32 = arith.constant 0 : i32
    %c0_i32_0 = arith.constant 0 : i32
    %c0_i32_1 = arith.constant 0 : i32
    return %c0_i32, %c0_i32_0 : i32, i32
  }
  func.func @transform_6(%arg0: i32, %arg1: i32) -> (i32, i32) {
    %c0_i32 = arith.constant 0 : i32
    %c0_i32_0 = arith.constant 0 : i32
    %c0_i32_1 = arith.constant 0 : i32
    return %c0_i32, %c0_i32_0 : i32, i32
  }
  func.func @transform_7(%arg0: i32, %arg1: i32) -> (i32, i32) {
    %c0_i32 = arith.constant 0 : i32
    %c0_i32_0 = arith.constant 0 : i32
    %c0_i32_1 = arith.constant 0 : i32
    return %c0_i32, %c0_i32_0 : i32, i32
  }
  func.func @transform_8(%arg0: i32, %arg1: i32) -> (i32, i32) {
    %c0_i32 = arith.constant 0 : i32
    %c0_i32_0 = arith.constant 0 : i32
    %c0_i32_1 = arith.constant 0 : i32
    return %c0_i32, %c0_i32_0 : i32, i32
  }
  func.func @transform_9(%arg0: i32, %arg1: i32) -> (i32, i32, i32) {
    %c0_i32 = arith.constant 0 : i32
    %c0_i32_0 = arith.constant 0 : i32
    %c0_i32_1 = arith.constant 0 : i32
    return %arg0, %c0_i32, %c0_i32_0 : i32, i32, i32
  }
}

</mosaic_0001>

<llo_original>
// kernel: tpu_custom_call.1
$region0: #{tpu_custom_call.1}
  #allocation0 [shape = 'u32[]', space=smem, size = 0x4, offset = 0x4, fixed_abs, tag = 'smem constant byte address 0x4 - core index']
  #allocation1 [shape = 'u32[72,128]{1,0:T(1,128)}', space=vmem, size = 0x9000, scoped, tag = 'internal scratch']
  #allocation2 [shape = 'bf16[128,256]{1,0:T(8,128)(2,1)}', space=vmem, size = 0x10000, scoped, tag = 'scratch operand']
  %s0 = inlined_call_operand.hbm [shape: bf16[2,128,256], index: 0, kind: input, shape index: {}]
  %s1 = inlined_call_operand.hbm [shape: bf16[2,128,256], index: 1, kind: input, shape index: {}]
  %s2 = inlined_call_operand.hbm [shape: bf16[2,128,256], index: 2, kind: input, shape index: {}]
  %s3 = inlined_call_operand.hbm [shape: bf16[256,256], index: 3, kind: input, shape index: {}]
  %s4 = inlined_call_operand.hbm [shape: bf16[256,256], index: 4, kind: input, shape index: {}]
  %s5 = inlined_call_operand.hbm [shape: bf16[256,256], index: 5, kind: input, shape index: {}]
  %s6 = inlined_call_operand.vmem [shape: f32[1,256], index: 6, kind: input, shape index: {}]
  %s7 = inlined_call_operand.vmem [shape: f32[1,256], index: 7, kind: input, shape index: {}]
  %s8 = inlined_call_operand.vmem [shape: f32[1,256], index: 8, kind: input, shape index: {}]
  %s9 = inlined_call_operand.hbm [shape: f32[2,128,256], index: 9, kind: output, shape index: {}]
  %s10 = sld [smem:[#allocation0]]
  $region97: #{tpu_custom_call.1} parent=0
    _
  %s12 = ssub.s32 1, %s10
  %s13 = scalar_select 0, %s12, %s10
  $region1: #{tpu_custom_call.1} parent=0
    #allocation3 [shape = 'u8[131072]{0}', space=vmem, size = 0x20000, scoped, tag = 'input window, operand 0']
    #allocation4 [shape = 's32[2]{0}', space=sflag, size = 0x8, scoped, tag = 'scoped memory for tpu_custom_call.1']
    #allocation5 [shape = 's32[2]{0}', space=sflag, size = 0x8, scoped, tag = 'scoped memory for tpu_custom_call.1']
    #allocation6 [shape = 'u8[131072]{0}', space=vmem, size = 0x20000, scoped, tag = 'input window, operand 1']
    #allocation7 [shape = 's32[2]{0}', space=sflag, size = 0x8, scoped, tag = 'scoped memory for tpu_custom_call.1']
    #allocation8 [shape = 'u8[131072]{0}', space=vmem, size = 0x20000, scoped, tag = 'input window, operand 2']
    #allocation9 [shape = 'u8[131072]{0}', space=vmem, size = 0x20000, scoped, tag = 'input window, operand 3, single buffered']
    #allocation10 [shape = 's32[1]{0}', space=sflag, size = 0x4, scoped, tag = 'scoped memory for tpu_custom_call.1']
    #allocation11 [shape = 'u8[131072]{0}', space=vmem, size = 0x20000, scoped, tag = 'input window, operand 4, single buffered']
    #allocation12 [shape = 'u8[131072]{0}', space=vmem, size = 0x20000, scoped, tag = 'input window, operand 5, single buffered']
    #allocation13 [shape = 's32[1]{0}', space=sflag, size = 0x4, scoped, tag = 'scoped memory for tpu_custom_call.1']
    #allocation14 [shape = 'u8[262144]{0}', space=vmem, size = 0x40000, scoped, tag = 'output window, operand 0']
    %14 = vsyncpa [#allocation4], 0
    %s15 = scalar_lea.sflag [#allocation4], 1
    %16 = vsyncpa %s15, 0
    %17 = vsyncpa [#allocation7], 0
    %s18 = scalar_lea.sflag [#allocation7], 1
    %19 = vsyncpa %s18, 0
    %20 = vsyncpa [#allocation10], 0
    %21 = vsyncpa [#allocation13], 0
    %22 = vsyncpa [#allocation5], 0
    %s23 = scalar_lea.sflag [#allocation5], 1
    %24 = vsyncpa %s23, 0
    loop: start=0, step=1, limit=4
    $region2: #{tpu_custom_call.1} parent=1 // loop_pre_header
      _
    $region3: #{tpu_custom_call.1} parent=1 // loop_header
      %s26 = sphi 0, %s30
      %p27 = scmp.ge.s32.totalorder %s26, 4
      %s33 = sphi 0, %s45
      %s34 = sphi 0, %s41
      %s35 = sphi 0, %s33
      %s36 = sphi 0, %s34
      %s37 = sphi 0, %s35
      %s38 = sphi 0, %s36
      %s48 = sphi 0, %s50
      %s51 = sphi 0, %s48
      %s52 = sphi 0, %s51
      %s68 = sphi 0, %s52
      %s76 = sphi 0, %s78
      %s79 = sphi 0, %s76
      %s80 = sphi 0, %s79
      %s96 = sphi 0, %s80
      %s104 = sphi 0, %s106
      %s107 = sphi 0, %s104
      %s108 = sphi 0, %s107
      %s124 = sphi 0, %s108
      %s128 = sphi 0, %s128
      %s130 = sphi 0, %s128
      %s131 = sphi 0, %s130
      %s145 = sphi 0, %s131
      %s149 = sphi 0, %s149
      %s151 = sphi 0, %s149
      %s152 = sphi 0, %s151
      %s166 = sphi 0, %s152
      %s170 = sphi 0, %s170
      %s172 = sphi 0, %s170
      %s173 = sphi 0, %s172
      %s187 = sphi 0, %s173
      %s191 = sphi 0, %s191
      %s193 = sphi 0, %s191
      %s194 = sphi 0, %s193
      %s208 = sphi 0, %s194
      %s212 = sphi 0, %s212
      %s214 = sphi 0, %s212
      %s215 = sphi 0, %s214
      %s229 = sphi 0, %s215
      %s233 = sphi 0, %s233
      %s235 = sphi 0, %s233
      %s236 = sphi 0, %s235
      %s250 = sphi 0, %s236
      %s256 = sphi 0, %s258
      %s259 = sphi 0, %s256
      %s260 = sphi 0, %s259
      %s276 = sphi 0, %s260
    $region4: #{tpu_custom_call.1} parent=1 // loop_header_branch
      %29 = sbr.rel (%p27) target = $region8
    $region5: #{tpu_custom_call.1} parent=1 // loop_body
      %s31 = ssub.s32 %s26, 1
      %s32 = ssub.s32 %s26, 2
      %s39 = sadd.s32 1, %s34
      %p40 = scmp.ge.s32.totalorder %s39, 1
      %s41 = scalar_select %p40, 0, %s39
      %s42 = sadd.s32 1, %s33
      %s43 = scalar_select %p40, %s42, %s33
      %p44 = scmp.ge.s32.totalorder %s43, 2
      %s45 = scalar_select %p44, 0, %s43
      %s46 = ssub.s32 %s33, %s45
      %p47 = scmp.eq.s32.totalorder %s46, 0
      %s49 = sadd.s32 %s48, 1
      %s50 = scalar_select %p47, %s48, %s49
      %p53 = pneg %p47
      %p54 = scmp.eq.s32.totalorder %s26, 1
      %p55 = por %p53, %p54
      %p56 = scmp.ne.s32.totalorder %s48, %s51
      %p57 = scmp.eq.s32.totalorder %s26, 0
      %p58 = por %p56, %p57
      %p59 = scmp.ne.s32.totalorder %s48, %s51
      %p60 = scmp.eq.s32.totalorder %s31, 1
      %p61 = por %p59, %p60
      %p62 = scmp.ne.s32.totalorder %s51, %s52
      %p63 = scmp.eq.s32.totalorder %s31, 0
      %p64 = por %p62, %p63
      %p65 = scmp.ne.s32.totalorder %s51, %s52
      %p66 = scmp.eq.s32.totalorder %s32, 1
      %p67 = por %p65, %p66
      %p69 = scmp.ne.s32.totalorder %s52, %s68
      %p70 = scmp.eq.s32.totalorder %s32, 0
      %p71 = por %p69, %p70
      %s72 = ssub.s32 %s33, %s45
      %s73 = ssub.s32 %s34, %s41
      %s74 = sor.u32 %s72, %s73
      %p75 = scmp.eq.s32.totalorder %s74, 0
      %s77 = sadd.s32 %s76, 1
      %s78 = scalar_select %p75, %s76, %s77
      %p81 = pneg %p75
      %p82 = scmp.eq.s32.totalorder %s26, 1
      %p83 = por %p81, %p82
      %p84 = scmp.ne.s32.totalorder %s76, %s79
      %p85 = scmp.eq.s32.totalorder %s26, 0
      %p86 = por %p84, %p85
      %p87 = scmp.ne.s32.totalorder %s76, %s79
      %p88 = scmp.eq.s32.totalorder %s31, 1
      %p89 = por %p87, %p88
      %p90 = scmp.ne.s32.totalorder %s79, %s80
      %p91 = scmp.eq.s32.totalorder %s31, 0
      %p92 = por %p90, %p91
      %p93 = scmp.ne.s32.totalorder %s79, %s80
      %p94 = scmp.eq.s32.totalorder %s32, 1
      %p95 = por %p93, %p94
      %p97 = scmp.ne.s32.totalorder %s80, %s96
      %p98 = scmp.eq.s32.totalorder %s32, 0
      %p99 = por %p97, %p98
      %s100 = ssub.s32 %s33, %s45
      %s101 = ssub.s32 %s34, %s41
      %s102 = sor.u32 %s100, %s101
      %p103 = scmp.eq.s32.totalorder %s102, 0
      %s105 = sadd.s32 %s104, 1
      %s106 = scalar_select %p103, %s104, %s105
      %p109 = pneg %p103
      %p110 = scmp.eq.s32.totalorder %s26, 1
      %p111 = por %p109, %p110
      %p112 = scmp.ne.s32.totalorder %s104, %s107
      %p113 = scmp.eq.s32.totalorder %s26, 0
      %p114 = por %p112, %p113
      %p115 = scmp.ne.s32.totalorder %s104, %s107
      %p116 = scmp.eq.s32.totalorder %s31, 1
      %p117 = por %p115, %p116
      %p118 = scmp.ne.s32.totalorder %s107, %s108
      %p119 = scmp.eq.s32.totalorder %s31, 0
      %p120 = por %p118, %p119
      %p121 = scmp.ne.s32.totalorder %s107, %s108
      %p122 = scmp.eq.s32.totalorder %s32, 1
      %p123 = por %p121, %p122
      %p125 = scmp.ne.s32.totalorder %s108, %s124
      %p126 = scmp.eq.s32.totalorder %s32, 0
      %p127 = por %p125, %p126
      %s129 = sadd.s32 %s128, 1
      %p132 = scmp.eq.s32.totalorder %s26, 1
      %p133 = scmp.ne.s32.totalorder %s128, %s130
      %p134 = scmp.eq.s32.totalorder %s26, 0
      %p135 = por %p133, %p134
      %p136 = scmp.ne.s32.totalorder %s128, %s130
      %p137 = scmp.eq.s32.totalorder %s31, 1
      %p138 = por %p136, %p137
      %p139 = scmp.ne.s32.totalorder %s130, %s131
      %p140 = scmp.eq.s32.totalorder %s31, 0
      %p141 = por %p139, %p140
      %p142 = scmp.ne.s32.totalorder %s130, %s131
      %p143 = scmp.eq.s32.totalorder %s32, 1
      %p144 = por %p142, %p143
      %p146 = scmp.ne.s32.totalorder %s131, %s145
      %p147 = scmp.eq.s32.totalorder %s32, 0
      %p148 = por %p146, %p147
      %s150 = sadd.s32 %s149, 1
      %p153 = scmp.eq.s32.totalorder %s26, 1
      %p154 = scmp.ne.s32.totalorder %s149, %s151
      %p155 = scmp.eq.s32.totalorder %s26, 0
      %p156 = por %p154, %p155
      %p157 = scmp.ne.s32.totalorder %s149, %s151
      %p158 = scmp.eq.s32.totalorder %s31, 1
      %p159 = por %p157, %p158
      %p160 = scmp.ne.s32.totalorder %s151, %s152
      %p161 = scmp.eq.s32.totalorder %s31, 0
      %p162 = por %p160, %p161
      %p163 = scmp.ne.s32.totalorder %s151, %s152
      %p164 = scmp.eq.s32.totalorder %s32, 1
      %p165 = por %p163, %p164
      %p167 = scmp.ne.s32.totalorder %s152, %s166
      %p168 = scmp.eq.s32.totalorder %s32, 0
      %p169 = por %p167, %p168
      %s171 = sadd.s32 %s170, 1
      %p174 = scmp.eq.s32.totalorder %s26, 1
      %p175 = scmp.ne.s32.totalorder %s170, %s172
      %p176 = scmp.eq.s32.totalorder %s26, 0
      %p177 = por %p175, %p176
      %p178 = scmp.ne.s32.totalorder %s170, %s172
      %p179 = scmp.eq.s32.totalorder %s31, 1
      %p180 = por %p178, %p179
      %p181 = scmp.ne.s32.totalorder %s172, %s173
      %p182 = scmp.eq.s32.totalorder %s31, 0
      %p183 = por %p181, %p182
      %p184 = scmp.ne.s32.totalorder %s172, %s173
      %p185 = scmp.eq.s32.totalorder %s32, 1
      %p186 = por %p184, %p185
      %p188 = scmp.ne.s32.totalorder %s173, %s187
      %p189 = scmp.eq.s32.totalorder %s32, 0
      %p190 = por %p188, %p189
      %s192 = sadd.s32 %s191, 1
      %p195 = scmp.eq.s32.totalorder %s26, 1
      %p196 = scmp.ne.s32.totalorder %s191, %s193
      %p197 = scmp.eq.s32.totalorder %s26, 0
      %p198 = por %p196, %p197
      %p199 = scmp.ne.s32.totalorder %s191, %s193
      %p200 = scmp.eq.s32.totalorder %s31, 1
      %p201 = por %p199, %p200
      %p202 = scmp.ne.s32.totalorder %s193, %s194
      %p203 = scmp.eq.s32.totalorder %s31, 0
      %p204 = por %p202, %p203
      %p205 = scmp.ne.s32.totalorder %s193, %s194
      %p206 = scmp.eq.s32.totalorder %s32, 1
      %p207 = por %p205, %p206
      %p209 = scmp.ne.s32.totalorder %s194, %s208
      %p210 = scmp.eq.s32.totalorder %s32, 0
      %p211 = por %p209, %p210
      %s213 = sadd.s32 %s212, 1
      %p216 = scmp.eq.s32.totalorder %s26, 1
      %p217 = scmp.ne.s32.totalorder %s212, %s214
      %p218 = scmp.eq.s32.totalorder %s26, 0
      %p219 = por %p217, %p218
      %p220 = scmp.ne.s32.totalorder %s212, %s214
      %p221 = scmp.eq.s32.totalorder %s31, 1
      %p222 = por %p220, %p221
      %p223 = scmp.ne.s32.totalorder %s214, %s215
      %p224 = scmp.eq.s32.totalorder %s31, 0
      %p225 = por %p223, %p224
      %p226 = scmp.ne.s32.totalorder %s214, %s215
      %p227 = scmp.eq.s32.totalorder %s32, 1
      %p228 = por %p226, %p227
      %p230 = scmp.ne.s32.totalorder %s215, %s229
      %p231 = scmp.eq.s32.totalorder %s32, 0
      %p232 = por %p230, %p231
      %s234 = sadd.s32 %s233, 1
      %p237 = scmp.eq.s32.totalorder %s26, 1
      %p238 = scmp.ne.s32.totalorder %s233, %s235
      %p239 = scmp.eq.s32.totalorder %s26, 0
      %p240 = por %p238, %p239
      %p241 = scmp.ne.s32.totalorder %s233, %s235
      %p242 = scmp.eq.s32.totalorder %s31, 1
      %p243 = por %p241, %p242
      %p244 = scmp.ne.s32.totalorder %s235, %s236
      %p245 = scmp.eq.s32.totalorder %s31, 0
      %p246 = por %p244, %p245
      %p247 = scmp.ne.s32.totalorder %s235, %s236
      %p248 = scmp.eq.s32.totalorder %s32, 1
      %p249 = por %p247, %p248
      %p251 = scmp.ne.s32.totalorder %s236, %s250
      %p252 = scmp.eq.s32.totalorder %s32, 0
      %p253 = por %p251, %p252
      %s254 = ssub.s32 %s33, %s45
      %p255 = scmp.eq.s32.totalorder %s254, 0
      %s257 = sadd.s32 %s256, 1
      %s258 = scalar_select %p255, %s256, %s257
      %p261 = pneg %p255
      %p262 = scmp.eq.s32.totalorder %s26, 1
      %p263 = por %p261, %p262
      %p264 = scmp.ne.s32.totalorder %s256, %s259
      %p265 = scmp.eq.s32.totalorder %s26, 0
      %p266 = por %p264, %p265
      %p267 = scmp.ne.s32.totalorder %s256, %s259
      %p268 = scmp.eq.s32.totalorder %s31, 1
      %p269 = por %p267, %p268
      %p270 = scmp.ne.s32.totalorder %s259, %s260
      %p271 = scmp.eq.s32.totalorder %s31, 0
      %p272 = por %p270, %p271
      %p273 = scmp.ne.s32.totalorder %s259, %s260
      %p274 = scmp.eq.s32.totalorder %s32, 1
      %p275 = por %p273, %p274
      %p277 = scmp.ne.s32.totalorder %s260, %s276
      %p278 = scmp.eq.s32.totalorder %s32, 0
      %p279 = por %p277, %p278
      %p280 = scmp.le.s32.totalorder 1, %s26
      %p281 = scmp.lt.s32.totalorder %s26, 3
      %p282 = pnand %p280, %p281
      %p283 = pneg %p282
      // Predicated region
      $region9: #{tpu_custom_call.1} parent=5 // pred_check
        _
      $region10: #{tpu_custom_call.1} parent=5 // pred_check_branch
        %285 = sbr.rel (%p282) target = $region12
      $region11: #{tpu_custom_call.1} parent=5 // pred_region
        %s286 = ssub.s32 %s26, 1
        // Predicated region
        $region13: #{tpu_custom_call.1} parent=11 // pred_check
          %p287 = pneg %p141
        $region14: #{tpu_custom_call.1} parent=11 // pred_check_branch
          %289 = sbr.rel (%p287) target = $region16
        $region15: #{tpu_custom_call.1} parent=11 // pred_region
          %291 = vsyncadd [#allocation10], 0
          %s292 = sshll.u32 %s3, 4
          %s293 = int_to_ptr.hbm [resolvable:$true] %s292
          %s294 = sshll.u32 [#allocation9], 4
          %s295 = int_to_ptr.vmem [resolvable:$true] %s294
          %300 = dma.hbm_to_vmem [thread:$0]  %s293, 4096, %s295, [#allocation10], 128, 128, 8
        $region16: #{tpu_custom_call.1} parent=11 // pred_fallthru
          _
        // Predicated region
        $region17: #{tpu_custom_call.1} parent=11 // pred_check
          %p301 = pneg %p162
        $region18: #{tpu_custom_call.1} parent=11 // pred_check_branch
          %303 = sbr.rel (%p301) target = $region20
        $region19: #{tpu_custom_call.1} parent=11 // pred_region
          %305 = vsyncadd [#allocation10], 0
          %s306 = sshll.u32 %s4, 4
          %s307 = int_to_ptr.hbm [resolvable:$true] %s306
          %s308 = sshll.u32 [#allocation11], 4
          %s309 = int_to_ptr.vmem [resolvable:$true] %s308
          %314 = dma.hbm_to_vmem [thread:$0]  %s307, 4096, %s309, [#allocation10], 128, 128, 8
        $region20: #{tpu_custom_call.1} parent=11 // pred_fallthru
          _
        // Predicated region
        $region21: #{tpu_custom_call.1} parent=11 // pred_check
          %p315 = pneg %p183
        $region22: #{tpu_custom_call.1} parent=11 // pred_check_branch
          %317 = sbr.rel (%p315) target = $region24
        $region23: #{tpu_custom_call.1} parent=11 // pred_region
          %319 = vsyncadd [#allocation13], 0
          %s320 = sshll.u32 %s5, 4
          %s321 = int_to_ptr.hbm [resolvable:$true] %s320
          %s322 = sshll.u32 [#allocation12], 4
          %s323 = int_to_ptr.vmem [resolvable:$true] %s322
          %328 = dma.hbm_to_vmem [thread:$0]  %s321, 4096, %s323, [#allocation13], 128, 128, 8
        $region24: #{tpu_custom_call.1} parent=11 // pred_fallthru
          _
        // Predicated region
        $region25: #{tpu_custom_call.1} parent=11 // pred_check
          %p329 = pneg %p204
        $region26: #{tpu_custom_call.1} parent=11 // pred_check_branch
          %331 = sbr.rel (%p329) target = $region28
        $region27: #{tpu_custom_call.1} parent=11 // pred_region
          _
        $region28: #{tpu_custom_call.1} parent=11 // pred_fallthru
          _
        // Predicated region
        $region29: #{tpu_custom_call.1} parent=11 // pred_check
          %p332 = pneg %p225
        $region30: #{tpu_custom_call.1} parent=11 // pred_check_branch
          %334 = sbr.rel (%p332) target = $region32
        $region31: #{tpu_custom_call.1} parent=11 // pred_region
          _
        $region32: #{tpu_custom_call.1} parent=11 // pred_fallthru
          _
        // Predicated region
        $region33: #{tpu_custom_call.1} parent=11 // pred_check
          %p335 = pneg %p246
        $region34: #{tpu_custom_call.1} parent=11 // pred_check_branch
          %337 = sbr.rel (%p335) target = $region36
        $region35: #{tpu_custom_call.1} parent=11 // pred_region
          _
        $region36: #{tpu_custom_call.1} parent=11 // pred_fallthru
          _
      $region12: #{tpu_custom_call.1} parent=5 // pred_fallthru
        _
      %p338 = scmp.lt.s32.totalorder %s26, 2
      // Predicated region
      $region37: #{tpu_custom_call.1} parent=5 // pred_check
        %p339 = pneg %p338
      $region38: #{tpu_custom_call.1} parent=5 // pred_check_branch
        %341 = sbr.rel (%p339) target = $region40
      $region39: #{tpu_custom_call.1} parent=5 // pred_region
        // Predicated region
        $region41: #{tpu_custom_call.1} parent=39 // pred_check
          %p342 = pneg %p58
        $region42: #{tpu_custom_call.1} parent=39 // pred_check_branch
          %344 = sbr.rel (%p342) target = $region44
        $region43: #{tpu_custom_call.1} parent=39 // pred_region
          %s345 = sand.u32 %s48, 1
          %s346 = scalar_lea.sflag [#allocation4], %s345
          %s347 = sand.u32 %s48, 1
          %s348 = smul.addr %s347, 128
          %s349 = scalar_lea.vmem [#allocation3], %s348
          %351 = vsyncadd %s346, 0
          %s352 = smul.addr %s33, 32
          %s353 = smul.addr %s352, 4
          %s354 = scalar_lea.hbm %s0, %s353
          %s355 = sshll.u32 %s354, 4
          %s356 = int_to_ptr.hbm [resolvable:$true] %s355
          %s357 = sshll.u32 %s349, 4
          %s358 = int_to_ptr.vmem [resolvable:$true] %s357
          %363 = dma.hbm_to_vmem [thread:$0]  %s356, 2048, %s358, %s346, 128, 128, 8
        $region44: #{tpu_custom_call.1} parent=39 // pred_fallthru
          _
        // Predicated region
        $region45: #{tpu_custom_call.1} parent=39 // pred_check
          %p364 = pneg %p86
        $region46: #{tpu_custom_call.1} parent=39 // pred_check_branch
          %366 = sbr.rel (%p364) target = $region48
        $region47: #{tpu_custom_call.1} parent=39 // pred_region
          %s367 = sand.u32 %s26, 1
          %s368 = scalar_lea.sflag [#allocation7], %s367
          %s369 = sand.u32 %s76, 1
          %s370 = smul.addr %s369, 128
          %s371 = scalar_lea.vmem [#allocation6], %s370
          %s372 = smul.u32 16, %s34
          %374 = vsyncadd %s368, 0
          %s375 = smul.addr %s372, 2
          %s376 = smul.addr %s33, 32
          %s377 = sadd.s32 %s375, %s376
          %s378 = smul.addr %s377, 4
          %s379 = scalar_lea.hbm %s1, %s378
          %s380 = sshll.u32 %s379, 4
          %s381 = int_to_ptr.hbm [resolvable:$true] %s380
          %s382 = sshll.u32 %s371, 4
          %s383 = int_to_ptr.vmem [resolvable:$true] %s382
          %388 = dma.hbm_to_vmem [thread:$0]  %s381, 2048, %s383, %s368, 128, 128, 8
        $region48: #{tpu_custom_call.1} parent=39 // pred_fallthru
          _
        // Predicated region
        $region49: #{tpu_custom_call.1} parent=39 // pred_check
          %p389 = pneg %p114
        $region50: #{tpu_custom_call.1} parent=39 // pred_check_branch
          %391 = sbr.rel (%p389) target = $region52
        $region51: #{tpu_custom_call.1} parent=39 // pred_region
          %s392 = sand.u32 %s26, 1
          %s393 = scalar_lea.sflag [#allocation7], %s392
          %s394 = sand.u32 %s104, 1
          %s395 = smul.addr %s394, 128
          %s396 = scalar_lea.vmem [#allocation8], %s395
          %s397 = smul.u32 16, %s34
          %399 = vsyncadd %s393, 0
          %s400 = smul.addr %s397, 2
          %s401 = smul.addr %s33, 32
          %s402 = sadd.s32 %s400, %s401
          %s403 = smul.addr %s402, 4
          %s404 = scalar_lea.hbm %s2, %s403
          %s405 = sshll.u32 %s404, 4
          %s406 = int_to_ptr.hbm [resolvable:$true] %s405
          %s407 = sshll.u32 %s396, 4
          %s408 = int_to_ptr.vmem [resolvable:$true] %s407
          %413 = dma.hbm_to_vmem [thread:$0]  %s406, 2048, %s408, %s393, 128, 128, 8
        $region52: #{tpu_custom_call.1} parent=39 // pred_fallthru
          _
      $region40: #{tpu_custom_call.1} parent=5 // pred_fallthru
        _
      %p414 = scmp.le.s32.totalorder 1, %s26
      %p415 = scmp.lt.s32.totalorder %s26, 3
      %p416 = pnand %p414, %p415
      %p417 = pneg %p416
      // Predicated region
      $region53: #{tpu_custom_call.1} parent=5 // pred_check
        _
      $region54: #{tpu_custom_call.1} parent=5 // pred_check_branch
        %419 = sbr.rel (%p416) target = $region56
      $region55: #{tpu_custom_call.1} parent=5 // pred_region
        %s420 = ssub.s32 %s26, 1
        %s421 = sand.u32 %s51, 1
        %s422 = scalar_lea.sflag [#allocation4], %s421
        %s423 = sand.u32 %s51, 1
        %s424 = smul.addr %s423, 128
        %s425 = scalar_lea.vmem [#allocation3], %s424
        // Predicated region
        $region57: #{tpu_custom_call.1} parent=55 // pred_check
          %p426 = pneg %p64
        $region58: #{tpu_custom_call.1} parent=55 // pred_check_branch
          %428 = sbr.rel (%p426) target = $region60
        $region59: #{tpu_custom_call.1} parent=55 // pred_region
          %430 = dma.done %s422, 2048
        $region60: #{tpu_custom_call.1} parent=55 // pred_fallthru
          _
        %s431 = sand.u32 %s31, 1
        %s432 = scalar_lea.sflag [#allocation7], %s431
        %s433 = sand.u32 %s79, 1
        %s434 = smul.addr %s433, 128
        %s435 = scalar_lea.vmem [#allocation6], %s434
        // Predicated region
        $region61: #{tpu_custom_call.1} parent=55 // pred_check
          %p436 = pneg %p92
        $region62: #{tpu_custom_call.1} parent=55 // pred_check_branch
          %438 = sbr.rel (%p436) target = $region64
        $region63: #{tpu_custom_call.1} parent=55 // pred_region
          %440 = dma.done %s432, 2048
        $region64: #{tpu_custom_call.1} parent=55 // pred_fallthru
          _
        %s441 = sand.u32 %s31, 1
        %s442 = scalar_lea.sflag [#allocation7], %s441
        %s443 = sand.u32 %s107, 1
        %s444 = smul.addr %s443, 128
        %s445 = scalar_lea.vmem [#allocation8], %s444
        // Predicated region
        $region65: #{tpu_custom_call.1} parent=55 // pred_check
          %p446 = pneg %p120
        $region66: #{tpu_custom_call.1} parent=55 // pred_check_branch
          %448 = sbr.rel (%p446) target = $region68
        $region67: #{tpu_custom_call.1} parent=55 // pred_region
          %450 = dma.done %s442, 2048
        $region68: #{tpu_custom_call.1} parent=55 // pred_fallthru
          _
        // Predicated region
        $region69: #{tpu_custom_call.1} parent=55 // pred_check
          %p451 = pneg %p141
        $region70: #{tpu_custom_call.1} parent=55 // pred_check_branch
          %453 = sbr.rel (%p451) target = $region72
        $region71: #{tpu_custom_call.1} parent=55 // pred_region
          %455 = dma.done [#allocation10], 4096
        $region72: #{tpu_custom_call.1} parent=55 // pred_fallthru
          _
        // Predicated region
        $region73: #{tpu_custom_call.1} parent=55 // pred_check
          %p456 = pneg %p162
        $region74: #{tpu_custom_call.1} parent=55 // pred_check_branch
          %458 = sbr.rel (%p456) target = $region76
        $region75: #{tpu_custom_call.1} parent=55 // pred_region
          %460 = dma.done [#allocation10], 4096
        $region76: #{tpu_custom_call.1} parent=55 // pred_fallthru
          _
        // Predicated region
        $region77: #{tpu_custom_call.1} parent=55 // pred_check
          %p461 = pneg %p183
        $region78: #{tpu_custom_call.1} parent=55 // pred_check_branch
          %463 = sbr.rel (%p461) target = $region80
        $region79: #{tpu_custom_call.1} parent=55 // pred_region
          %465 = dma.done [#allocation13], 4096
        $region80: #{tpu_custom_call.1} parent=55 // pred_fallthru
          _
        %s466 = sand.u32 %s51, 1
        %s467 = scalar_lea.sflag [#allocation4], %s466
        %s468 = sand.u32 %s51, 1
        %s469 = smul.addr %s468, 128
        %s470 = scalar_lea.vmem [#allocation3], %s469
        %p471 = pneg %p64
        %p472 = pneg %p61
        %s473 = sand.u32 %s31, 1
        %s474 = scalar_lea.sflag [#allocation7], %s473
        %s475 = sand.u32 %s79, 1
        %s476 = smul.addr %s475, 128
        %s477 = scalar_lea.vmem [#allocation6], %s476
        %p478 = pneg %p92
        %p479 = pneg %p89
        %s480 = sand.u32 %s31, 1
        %s481 = scalar_lea.sflag [#allocation7], %s480
        %s482 = sand.u32 %s107, 1
        %s483 = smul.addr %s482, 128
        %s484 = scalar_lea.vmem [#allocation8], %s483
        %p485 = pneg %p120
        %p486 = pneg %p117
        %p487 = pneg %p141
        %p488 = pneg %p138
        %p489 = pneg %p162
        %p490 = pneg %p159
        %p491 = pneg %p183
        %p492 = pneg %p180
        %p493 = pneg %p204
        %p494 = pneg %p201
        %p495 = pneg %p225
        %p496 = pneg %p222
        %p497 = pneg %p246
        %p498 = pneg %p243
        %p499 = pneg %p272
        %p500 = pneg %p269
        %s501 = sand.u32 %s259, 1
        %s502 = scalar_lea.sflag [#allocation5], %s501
        %s503 = sand.u32 %s259, 1
        %s504 = smul.addr %s503, 256
        %s505 = scalar_lea.vmem [#allocation14], %s504
        %s506 = smul.u32 16, %s36
        %s507 = smul.u32 16, %s36
        %p508 = scmp.eq.s32.totalorder %s36, 0
        // Predicated region
        $region81: #{tpu_custom_call.1} parent=55 // pred_check
          %p509 = pneg %p508
        $region82: #{tpu_custom_call.1} parent=55 // pred_check_branch
          %511 = sbr.rel (%p509) target = $region84
        $region83: #{tpu_custom_call.1} parent=55 // pred_region
          %v512 = vld [vmem:[%s425] sm:$0xff]
          %v513 = vld [vmem:[%s425 + $0x8] sm:$0xff]
          %v514 = vld [vmem:[%s425 + $0x10] sm:$0xff]
          %v515 = vld [vmem:[%s425 + $0x18] sm:$0xff]
          %v516 = vld [vmem:[%s425 + $0x20] sm:$0xff]
          %v517 = vld [vmem:[%s425 + $0x28] sm:$0xff]
          %v518 = vld [vmem:[%s425 + $0x30] sm:$0xff]
          %v519 = vld [vmem:[%s425 + $0x38] sm:$0xff]
          %v520 = vld [vmem:[%s425 + $0x40] sm:$0xff]
          %v521 = vld [vmem:[%s425 + $0x48] sm:$0xff]
          %v522 = vld [vmem:[%s425 + $0x50] sm:$0xff]
          %v523 = vld [vmem:[%s425 + $0x58] sm:$0xff]
          %v524 = vld [vmem:[%s425 + $0x60] sm:$0xff]
          %v525 = vld [vmem:[%s425 + $0x68] sm:$0xff]
          %v526 = vld [vmem:[%s425 + $0x70] sm:$0xff]
          %v527 = vld [vmem:[%s425 + $0x78] sm:$0xff]
          %v528 = vld [vmem:[#allocation9] sm:$0xff]
          %v529 = vld [vmem:[#allocation9 + $0x8] sm:$0xff]
          %v530 = vld [vmem:[#allocation9 + $0x10] sm:$0xff]
          %v531 = vld [vmem:[#allocation9 + $0x18] sm:$0xff]
          %v532 = vld [vmem:[#allocation9 + $0x20] sm:$0xff]
          %v533 = vld [vmem:[#allocation9 + $0x28] sm:$0xff]
          %v534 = vld [vmem:[#allocation9 + $0x30] sm:$0xff]
          %v535 = vld [vmem:[#allocation9 + $0x38] sm:$0xff]
          %v536 = vld [vmem:[#allocation9 + $0x40] sm:$0xff]
          %v537 = vld [vmem:[#allocation9 + $0x48] sm:$0xff]
          %v538 = vld [vmem:[#allocation9 + $0x50] sm:$0xff]
          %v539 = vld [vmem:[#allocation9 + $0x58] sm:$0xff]
          %v540 = vld [vmem:[#allocation9 + $0x60] sm:$0xff]
          %v541 = vld [vmem:[#allocation9 + $0x68] sm:$0xff]
          %v542 = vld [vmem:[#allocation9 + $0x70] sm:$0xff]
          %v543 = vld [vmem:[#allocation9 + $0x78] sm:$0xff]
          %v544 = vld [vmem:[#allocation9 + $0x80] sm:$0xff]
          %v545 = vld [vmem:[#allocation9 + $0x88] sm:$0xff]
          %v546 = vld [vmem:[#allocation9 + $0x90] sm:$0xff]
          %v547 = vld [vmem:[#allocation9 + $0x98] sm:$0xff]
          %v548 = vld [vmem:[#allocation9 + $0xa0] sm:$0xff]
          %v549 = vld [vmem:[#allocation9 + $0xa8] sm:$0xff]
          %v550 = vld [vmem:[#allocation9 + $0xb0] sm:$0xff]
          %v551 = vld [vmem:[#allocation9 + $0xb8] sm:$0xff]
          %v552 = vld [vmem:[#allocation9 + $0xc0] sm:$0xff]
          %v553 = vld [vmem:[#allocation9 + $0xc8] sm:$0xff]
          %v554 = vld [vmem:[#allocation9 + $0xd0] sm:$0xff]
          %v555 = vld [vmem:[#allocation9 + $0xd8] sm:$0xff]
          %v556 = vld [vmem:[#allocation9 + $0xe0] sm:$0xff]
          %v557 = vld [vmem:[#allocation9 + $0xe8] sm:$0xff]
          %v558 = vld [vmem:[#allocation9 + $0xf0] sm:$0xff]
          %v559 = vld [vmem:[#allocation9 + $0xf8] sm:$0xff]
          %v560 = vld [vmem:[%s6] sm:$0x3]
          %v562 = vperm.slane %v560, 0
          %v563 = vperm.slane %v560, 1
          %v582 = vunpack.c.l.b16 %v512
          %v583 = vunpack.c.h.b16 %v512
          %v584 = vunpack.c.l.b16 %v513
          %v585 = vunpack.c.h.b16 %v513
          %v586 = vunpack.c.l.b16 %v514
          %v587 = vunpack.c.h.b16 %v514
          %v588 = vunpack.c.l.b16 %v515
          %v589 = vunpack.c.h.b16 %v515
          %v590 = vunpack.c.l.b16 %v516
          %v591 = vunpack.c.h.b16 %v516
          %v592 = vunpack.c.l.b16 %v517
          %v593 = vunpack.c.h.b16 %v517
          %v594 = vunpack.c.l.b16 %v518
          %v595 = vunpack.c.h.b16 %v518
          %v596 = vunpack.c.l.b16 %v519
          %v597 = vunpack.c.h.b16 %v519
          %v598 = vunpack.c.l.b16 %v520
          %v599 = vunpack.c.h.b16 %v520
          %v600 = vunpack.c.l.b16 %v521
          %v601 = vunpack.c.h.b16 %v521
          %v602 = vunpack.c.l.b16 %v522
          %v603 = vunpack.c.h.b16 %v522
          %v604 = vunpack.c.l.b16 %v523
          %v605 = vunpack.c.h.b16 %v523
          %v606 = vunpack.c.l.b16 %v524
          %v607 = vunpack.c.h.b16 %v524
          %v608 = vunpack.c.l.b16 %v525
          %v609 = vunpack.c.h.b16 %v525
          %v610 = vunpack.c.l.b16 %v526
          %v611 = vunpack.c.h.b16 %v526
          %v612 = vunpack.c.l.b16 %v527
          %v613 = vunpack.c.h.b16 %v527
          %v614 = vpack.c.b16 %v584, %v582
          %v615 = vpack.c.b16 %v585, %v583
          %v616 = vpack.c.b16 %v588, %v586
          %v617 = vpack.c.b16 %v589, %v587
          %v618 = vpack.c.b16 %v592, %v590
          %v619 = vpack.c.b16 %v593, %v591
          %v620 = vpack.c.b16 %v596, %v594
          %v621 = vpack.c.b16 %v597, %v595
          %v622 = vpack.c.b16 %v600, %v598
          %v623 = vpack.c.b16 %v601, %v599
          %v624 = vpack.c.b16 %v604, %v602
          %v625 = vpack.c.b16 %v605, %v603
          %v626 = vpack.c.b16 %v608, %v606
          %v627 = vpack.c.b16 %v609, %v607
          %v628 = vpack.c.b16 %v612, %v610
          %v629 = vpack.c.b16 %v613, %v611
          %v678 = vunpack.c.l.b16 %v528
          %v679 = vunpack.c.h.b16 %v528
          %v680 = vunpack.c.l.b16 %v529
          %v681 = vunpack.c.h.b16 %v529
          %v682 = vunpack.c.l.b16 %v530
          %v683 = vunpack.c.h.b16 %v530
          %v684 = vunpack.c.l.b16 %v531
          %v685 = vunpack.c.h.b16 %v531
          %v686 = vunpack.c.l.b16 %v532
          %v687 = vunpack.c.h.b16 %v532
          %v688 = vunpack.c.l.b16 %v533
          %v689 = vunpack.c.h.b16 %v533
          %v690 = vunpack.c.l.b16 %v534
          %v691 = vunpack.c.h.b16 %v534
          %v692 = vunpack.c.l.b16 %v535
          %v693 = vunpack.c.h.b16 %v535
          %v694 = vunpack.c.l.b16 %v536
          %v695 = vunpack.c.h.b16 %v536
          %v696 = vunpack.c.l.b16 %v537
          %v697 = vunpack.c.h.b16 %v537
          %v698 = vunpack.c.l.b16 %v538
          %v699 = vunpack.c.h.b16 %v538
          %v700 = vunpack.c.l.b16 %v539
          %v701 = vunpack.c.h.b16 %v539
          %v702 = vunpack.c.l.b16 %v540
          %v703 = vunpack.c.h.b16 %v540
          %v704 = vunpack.c.l.b16 %v541
          %v705 = vunpack.c.h.b16 %v541
          %v706 = vunpack.c.l.b16 %v542
          %v707 = vunpack.c.h.b16 %v542
          %v708 = vunpack.c.l.b16 %v543
          %v709 = vunpack.c.h.b16 %v543
          %v710 = vunpack.c.l.b16 %v544
          %v711 = vunpack.c.h.b16 %v544
          %v712 = vunpack.c.l.b16 %v545
          %v713 = vunpack.c.h.b16 %v545
          %v714 = vunpack.c.l.b16 %v546
          %v715 = vunpack.c.h.b16 %v546
          %v716 = vunpack.c.l.b16 %v547
          %v717 = vunpack.c.h.b16 %v547
          %v718 = vunpack.c.l.b16 %v548
          %v719 = vunpack.c.h.b16 %v548
          %v720 = vunpack.c.l.b16 %v549
          %v721 = vunpack.c.h.b16 %v549
          %v722 = vunpack.c.l.b16 %v550
          %v723 = vunpack.c.h.b16 %v550
          %v724 = vunpack.c.l.b16 %v551
          %v725 = vunpack.c.h.b16 %v551
          %v726 = vunpack.c.l.b16 %v552
          %v727 = vunpack.c.h.b16 %v552
          %v728 = vunpack.c.l.b16 %v553
          %v729 = vunpack.c.h.b16 %v553
          %v730 = vunpack.c.l.b16 %v554
          %v731 = vunpack.c.h.b16 %v554
          %v732 = vunpack.c.l.b16 %v555
          %v733 = vunpack.c.h.b16 %v555
          %v734 = vunpack.c.l.b16 %v556
          %v735 = vunpack.c.h.b16 %v556
          %v736 = vunpack.c.l.b16 %v557
          %v737 = vunpack.c.h.b16 %v557
          %v738 = vunpack.c.l.b16 %v558
          %v739 = vunpack.c.h.b16 %v558
          %v740 = vunpack.c.l.b16 %v559
          %v741 = vunpack.c.h.b16 %v559
          %v742 = vpack.c.b16 %v680, %v678
          %v743 = vpack.c.b16 %v681, %v679
          %v744 = vpack.c.b16 %v684, %v682
          %v745 = vpack.c.b16 %v685, %v683
          %v746 = vpack.c.b16 %v688, %v686
          %v747 = vpack.c.b16 %v689, %v687
          %v748 = vpack.c.b16 %v692, %v690
          %v749 = vpack.c.b16 %v693, %v691
          %v750 = vpack.c.b16 %v696, %v694
          %v751 = vpack.c.b16 %v697, %v695
          %v752 = vpack.c.b16 %v700, %v698
          %v753 = vpack.c.b16 %v701, %v699
          %v754 = vpack.c.b16 %v704, %v702
          %v755 = vpack.c.b16 %v705, %v703
          %v756 = vpack.c.b16 %v708, %v706
          %v757 = vpack.c.b16 %v709, %v707
          %v758 = vpack.c.b16 %v712, %v710
          %v759 = vpack.c.b16 %v713, %v711
          %v760 = vpack.c.b16 %v716, %v714
          %v761 = vpack.c.b16 %v717, %v715
          %v762 = vpack.c.b16 %v720, %v718
          %v763 = vpack.c.b16 %v721, %v719
          %v764 = vpack.c.b16 %v724, %v722
          %v765 = vpack.c.b16 %v725, %v723
          %v766 = vpack.c.b16 %v728, %v726
          %v767 = vpack.c.b16 %v729, %v727
          %v768 = vpack.c.b16 %v732, %v730
          %v769 = vpack.c.b16 %v733, %v731
          %v770 = vpack.c.b16 %v736, %v734
          %v771 = vpack.c.b16 %v737, %v735
          %v772 = vpack.c.b16 %v740, %v738
          %v773 = vpack.c.b16 %v741, %v739
          %806 = vmatpush.bf16.msra.mxu0 %v756
          %807 = vmatpush.bf16.msra.mxu0 %v754
          %808 = vmatpush.bf16.msra.mxu0 %v752
          %809 = vmatpush.bf16.msra.mxu0 %v750
          %810 = vmatpush.bf16.msra.mxu0 %v748
          %811 = vmatpush.bf16.msra.mxu0 %v746
          %812 = vmatpush.bf16.msra.mxu0 %v744
          %813 = vmatpush.bf16.msra.mxu0 %v742
          %814 = vmatmul.bf16.gmra.mxu0 %v614
          %v815 = vpop.f32.mrf.mxu0
          %v816 = vadd.f32 %v562, %v815
          %v817 = vpop.f32.mrf.mxu0
          %v818 = vadd.f32 %v562, %v817
          %819 = vmatmul.bf16.gmra.mxu0 %v616
          %v820 = vpop.f32.mrf.mxu0
          %v821 = vadd.f32 %v562, %v820
          %v822 = vpop.f32.mrf.mxu0
          %v823 = vadd.f32 %v562, %v822
          %824 = vmatmul.bf16.gmra.mxu0 %v618
          %v825 = vpop.f32.mrf.mxu0
          %v826 = vadd.f32 %v562, %v825
          %v827 = vpop.f32.mrf.mxu0
          %v828 = vadd.f32 %v562, %v827
          %829 = vmatmul.bf16.gmra.mxu0 %v620
          %v830 = vpop.f32.mrf.mxu0
          %v831 = vadd.f32 %v562, %v830
          %v832 = vpop.f32.mrf.mxu0
          %v833 = vadd.f32 %v562, %v832
          %834 = vmatmul.bf16.gmra.mxu0 %v622
          %v835 = vpop.f32.mrf.mxu0
          %v836 = vadd.f32 %v562, %v835
          %v837 = vpop.f32.mrf.mxu0
          %v838 = vadd.f32 %v562, %v837
          %839 = vmatmul.bf16.gmra.mxu0 %v624
          %v840 = vpop.f32.mrf.mxu0
          %v841 = vadd.f32 %v562, %v840
          %v842 = vpop.f32.mrf.mxu0
          %v843 = vadd.f32 %v562, %v842
          %844 = vmatmul.bf16.gmra.mxu0 %v626
          %v845 = vpop.f32.mrf.mxu0
          %v846 = vadd.f32 %v562, %v845
          %v847 = vpop.f32.mrf.mxu0
          %v848 = vadd.f32 %v562, %v847
          %849 = vmatmul.bf16.gmra.mxu0 %v628
          %v850 = vpop.f32.mrf.mxu0
          %v851 = vadd.f32 %v562, %v850
          %v852 = vpop.f32.mrf.mxu0
          %v853 = vadd.f32 %v562, %v852
          %854 = vdwg.mxu0
          %855 = vmatpush.bf16.msra.mxu0 %v772
          %856 = vmatpush.bf16.msra.mxu0 %v770
          %857 = vmatpush.bf16.msra.mxu0 %v768
          %858 = vmatpush.bf16.msra.mxu0 %v766
          %859 = vmatpush.bf16.msra.mxu0 %v764
          %860 = vmatpush.bf16.msra.mxu0 %v762
          %861 = vmatpush.bf16.msra.mxu0 %v760
          %862 = vmatpush.bf16.msra.mxu0 %v758
          %863 = vmatmul.bf16.gmra.mxu0 %v615
          %v864 = vpop.f32.mrf.mxu0
          %v865 = vadd.f32 %v816, %v864
          %v866 = vpop.f32.mrf.mxu0
          %v867 = vadd.f32 %v818, %v866
          %868 = vmatmul.bf16.gmra.mxu0 %v617
          %v869 = vpop.f32.mrf.mxu0
          %v870 = vadd.f32 %v821, %v869
          %v871 = vpop.f32.mrf.mxu0
          %v872 = vadd.f32 %v823, %v871
          %873 = vmatmul.bf16.gmra.mxu0 %v619
          %v874 = vpop.f32.mrf.mxu0
          %v875 = vadd.f32 %v826, %v874
          %v876 = vpop.f32.mrf.mxu0
          %v877 = vadd.f32 %v828, %v876
          %878 = vmatmul.bf16.gmra.mxu0 %v621
          %v879 = vpop.f32.mrf.mxu0
          %v880 = vadd.f32 %v831, %v879
          %v881 = vpop.f32.mrf.mxu0
          %v882 = vadd.f32 %v833, %v881
          %883 = vmatmul.bf16.gmra.mxu0 %v623
          %v884 = vpop.f32.mrf.mxu0
          %v885 = vadd.f32 %v836, %v884
          %v886 = vpop.f32.mrf.mxu0
          %v887 = vadd.f32 %v838, %v886
          %888 = vmatmul.bf16.gmra.mxu0 %v625
          %v889 = vpop.f32.mrf.mxu0
          %v890 = vadd.f32 %v841, %v889
          %v891 = vpop.f32.mrf.mxu0
          %v892 = vadd.f32 %v843, %v891
          %893 = vmatmul.bf16.gmra.mxu0 %v627
          %v894 = vpop.f32.mrf.mxu0
          %v895 = vadd.f32 %v846, %v894
          %v896 = vpop.f32.mrf.mxu0
          %v897 = vadd.f32 %v848, %v896
          %898 = vmatmul.bf16.gmra.mxu0 %v629
          %v899 = vpop.f32.mrf.mxu0
          %v900 = vadd.f32 %v851, %v899
          %v901 = vpop.f32.mrf.mxu0
          %v902 = vadd.f32 %v853, %v901
          %903 = vdwg.mxu0
          %904 = vmatpush.bf16.msra.mxu0 %v757
          %905 = vmatpush.bf16.msra.mxu0 %v755
          %906 = vmatpush.bf16.msra.mxu0 %v753
          %907 = vmatpush.bf16.msra.mxu0 %v751
          %908 = vmatpush.bf16.msra.mxu0 %v749
          %909 = vmatpush.bf16.msra.mxu0 %v747
          %910 = vmatpush.bf16.msra.mxu0 %v745
          %911 = vmatpush.bf16.msra.mxu0 %v743
          %912 = vmatmul.bf16.gmra.mxu0 %v614
          %v913 = vpop.f32.mrf.mxu0
          %v914 = vadd.f32 %v563, %v913
          %v915 = vpop.f32.mrf.mxu0
          %v916 = vadd.f32 %v563, %v915
          %917 = vmatmul.bf16.gmra.mxu0 %v616
          %v918 = vpop.f32.mrf.mxu0
          %v919 = vadd.f32 %v563, %v918
          %v920 = vpop.f32.mrf.mxu0
          %v921 = vadd.f32 %v563, %v920
          %922 = vmatmul.bf16.gmra.mxu0 %v618
          %v923 = vpop.f32.mrf.mxu0
          %v924 = vadd.f32 %v563, %v923
          %v925 = vpop.f32.mrf.mxu0
          %v926 = vadd.f32 %v563, %v925
          %927 = vmatmul.bf16.gmra.mxu0 %v620
          %v928 = vpop.f32.mrf.mxu0
          %v929 = vadd.f32 %v563, %v928
          %v930 = vpop.f32.mrf.mxu0
          %v931 = vadd.f32 %v563, %v930
          %932 = vmatmul.bf16.gmra.mxu0 %v622
          %v933 = vpop.f32.mrf.mxu0
          %v934 = vadd.f32 %v563, %v933
          %v935 = vpop.f32.mrf.mxu0
          %v936 = vadd.f32 %v563, %v935
          %937 = vmatmul.bf16.gmra.mxu0 %v624
          %v938 = vpop.f32.mrf.mxu0
          %v939 = vadd.f32 %v563, %v938
          %v940 = vpop.f32.mrf.mxu0
          %v941 = vadd.f32 %v563, %v940
          %942 = vmatmul.bf16.gmra.mxu0 %v626
          %v943 = vpop.f32.mrf.mxu0
          %v944 = vadd.f32 %v563, %v943
          %v945 = vpop.f32.mrf.mxu0
          %v946 = vadd.f32 %v563, %v945
          %947 = vmatmul.bf16.gmra.mxu0 %v628
          %v948 = vpop.f32.mrf.mxu0
          %v949 = vadd.f32 %v563, %v948
          %v950 = vpop.f32.mrf.mxu0
          %v951 = vadd.f32 %v563, %v950
          %952 = vdwg.mxu0
          %953 = vmatpush.bf16.msra.mxu0 %v773
          %954 = vmatpush.bf16.msra.mxu0 %v771
          %955 = vmatpush.bf16.msra.mxu0 %v769
          %956 = vmatpush.bf16.msra.mxu0 %v767
          %957 = vmatpush.bf16.msra.mxu0 %v765
          %958 = vmatpush.bf16.msra.mxu0 %v763
          %959 = vmatpush.bf16.msra.mxu0 %v761
          %960 = vmatpush.bf16.msra.mxu0 %v759
          %961 = vmatmul.bf16.gmra.mxu0 %v615
          %v962 = vpop.f32.mrf.mxu0
          %v963 = vadd.f32 %v914, %v962
          %v964 = vpop.f32.mrf.mxu0
          %v965 = vadd.f32 %v916, %v964
          %966 = vmatmul.bf16.gmra.mxu0 %v617
          %v967 = vpop.f32.mrf.mxu0
          %v968 = vadd.f32 %v919, %v967
          %v969 = vpop.f32.mrf.mxu0
          %v970 = vadd.f32 %v921, %v969
          %971 = vmatmul.bf16.gmra.mxu0 %v619
          %v972 = vpop.f32.mrf.mxu0
          %v973 = vadd.f32 %v924, %v972
          %v974 = vpop.f32.mrf.mxu0
          %v975 = vadd.f32 %v926, %v974
          %976 = vmatmul.bf16.gmra.mxu0 %v621
          %v977 = vpop.f32.mrf.mxu0
          %v978 = vadd.f32 %v929, %v977
          %v979 = vpop.f32.mrf.mxu0
          %v980 = vadd.f32 %v931, %v979
          %981 = vmatmul.bf16.gmra.mxu0 %v623
          %v982 = vpop.f32.mrf.mxu0
          %v983 = vadd.f32 %v934, %v982
          %v984 = vpop.f32.mrf.mxu0
          %v985 = vadd.f32 %v936, %v984
          %986 = vmatmul.bf16.gmra.mxu0 %v625
          %v987 = vpop.f32.mrf.mxu0
          %v988 = vadd.f32 %v939, %v987
          %v989 = vpop.f32.mrf.mxu0
          %v990 = vadd.f32 %v941, %v989
          %991 = vmatmul.bf16.gmra.mxu0 %v627
          %v992 = vpop.f32.mrf.mxu0
          %v993 = vadd.f32 %v944, %v992
          %v994 = vpop.f32.mrf.mxu0
          %v995 = vadd.f32 %v946, %v994
          %996 = vmatmul.bf16.gmra.mxu0 %v629
          %v997 = vpop.f32.mrf.mxu0
          %v998 = vadd.f32 %v949, %v997
          %v999 = vpop.f32.mrf.mxu0
          %v1000 = vadd.f32 %v951, %v999
          %1001 = vdwg.mxu0
          %v1002 = vmul.f32 %v865, 0.088388346
          %v1003 = vmul.f32 %v963, 0.088388346
          %v1004 = vmul.f32 %v867, 0.088388346
          %v1005 = vmul.f32 %v965, 0.088388346
          %v1006 = vmul.f32 %v870, 0.088388346
          %v1007 = vmul.f32 %v968, 0.088388346
          %v1008 = vmul.f32 %v872, 0.088388346
          %v1009 = vmul.f32 %v970, 0.088388346
          %v1010 = vmul.f32 %v875, 0.088388346
          %v1011 = vmul.f32 %v973, 0.088388346
          %v1012 = vmul.f32 %v877, 0.088388346
          %v1013 = vmul.f32 %v975, 0.088388346
          %v1014 = vmul.f32 %v880, 0.088388346
          %v1015 = vmul.f32 %v978, 0.088388346
          %v1016 = vmul.f32 %v882, 0.088388346
          %v1017 = vmul.f32 %v980, 0.088388346
          %v1018 = vmul.f32 %v885, 0.088388346
          %v1019 = vmul.f32 %v983, 0.088388346
          %v1020 = vmul.f32 %v887, 0.088388346
          %v1021 = vmul.f32 %v985, 0.088388346
          %v1022 = vmul.f32 %v890, 0.088388346
          %v1023 = vmul.f32 %v988, 0.088388346
          %v1024 = vmul.f32 %v892, 0.088388346
          %v1025 = vmul.f32 %v990, 0.088388346
          %v1026 = vmul.f32 %v895, 0.088388346
          %v1027 = vmul.f32 %v993, 0.088388346
          %v1028 = vmul.f32 %v897, 0.088388346
          %v1029 = vmul.f32 %v995, 0.088388346
          %v1030 = vmul.f32 %v900, 0.088388346
          %v1031 = vmul.f32 %v998, 0.088388346
          %v1032 = vmul.f32 %v902, 0.088388346
          %v1033 = vmul.f32 %v1000, 0.088388346
          %v1034 = vpack.c.bf16 %v1003, %v1002
          %v1035 = vpack.c.bf16 %v1005, %v1004
          %v1036 = vpack.c.bf16 %v1007, %v1006
          %v1037 = vpack.c.bf16 %v1009, %v1008
          %v1038 = vpack.c.bf16 %v1011, %v1010
          %v1039 = vpack.c.bf16 %v1013, %v1012
          %v1040 = vpack.c.bf16 %v1015, %v1014
          %v1041 = vpack.c.bf16 %v1017, %v1016
          %v1042 = vpack.c.bf16 %v1019, %v1018
          %v1043 = vpack.c.bf16 %v1021, %v1020
          %v1044 = vpack.c.bf16 %v1023, %v1022
          %v1045 = vpack.c.bf16 %v1025, %v1024
          %v1046 = vpack.c.bf16 %v1027, %v1026
          %v1047 = vpack.c.bf16 %v1029, %v1028
          %v1048 = vpack.c.bf16 %v1031, %v1030
          %v1049 = vpack.c.bf16 %v1033, %v1032
          %1050 = vst [vmem:[#allocation2] sm:$0xff] %v1034
          %1051 = vst [vmem:[#allocation2 + $0x8] sm:$0xff] %v1035
          %1052 = vst [vmem:[#allocation2 + $0x10] sm:$0xff] %v1036
          %1053 = vst [vmem:[#allocation2 + $0x18] sm:$0xff] %v1037
          %1054 = vst [vmem:[#allocation2 + $0x20] sm:$0xff] %v1038
          %1055 = vst [vmem:[#allocation2 + $0x28] sm:$0xff] %v1039
          %1056 = vst [vmem:[#allocation2 + $0x30] sm:$0xff] %v1040
          %1057 = vst [vmem:[#allocation2 + $0x38] sm:$0xff] %v1041
          %1058 = vst [vmem:[#allocation2 + $0x40] sm:$0xff] %v1042
          %1059 = vst [vmem:[#allocation2 + $0x48] sm:$0xff] %v1043
          %1060 = vst [vmem:[#allocation2 + $0x50] sm:$0xff] %v1044
          %1061 = vst [vmem:[#allocation2 + $0x58] sm:$0xff] %v1045
          %1062 = vst [vmem:[#allocation2 + $0x60] sm:$0xff] %v1046
          %1063 = vst [vmem:[#allocation2 + $0x68] sm:$0xff] %v1047
          %1064 = vst [vmem:[#allocation2 + $0x70] sm:$0xff] %v1048
          %1065 = vst [vmem:[#allocation2 + $0x78] sm:$0xff] %v1049
          %1066 = vst [vmem:[%s505] sm:$0xff] 0.0
          %1067 = vst [vmem:[%s505 + $0x8] sm:$0xff] 0.0
          %1068 = vst [vmem:[%s505 + $0x10] sm:$0xff] 0.0
          %1069 = vst [vmem:[%s505 + $0x18] sm:$0xff] 0.0
          %1070 = vst [vmem:[%s505 + $0x20] sm:$0xff] 0.0
          %1071 = vst [vmem:[%s505 + $0x28] sm:$0xff] 0.0
          %1072 = vst [vmem:[%s505 + $0x30] sm:$0xff] 0.0
          %1073 = vst [vmem:[%s505 + $0x38] sm:$0xff] 0.0
          %1074 = vst [vmem:[%s505 + $0x40] sm:$0xff] 0.0
          %1075 = vst [vmem:[%s505 + $0x48] sm:$0xff] 0.0
          %1076 = vst [vmem:[%s505 + $0x50] sm:$0xff] 0.0
          %1077 = vst [vmem:[%s505 + $0x58] sm:$0xff] 0.0
          %1078 = vst [vmem:[%s505 + $0x60] sm:$0xff] 0.0
          %1079 = vst [vmem:[%s505 + $0x68] sm:$0xff] 0.0
          %1080 = vst [vmem:[%s505 + $0x70] sm:$0xff] 0.0
          %1081 = vst [vmem:[%s505 + $0x78] sm:$0xff] 0.0
          %1082 = vst [vmem:[%s505 + $0x80] sm:$0xff] 0.0
          %1083 = vst [vmem:[%s505 + $0x88] sm:$0xff] 0.0
          %1084 = vst [vmem:[%s505 + $0x90] sm:$0xff] 0.0
          %1085 = vst [vmem:[%s505 + $0x98] sm:$0xff] 0.0
          %1086 = vst [vmem:[%s505 + $0xa0] sm:$0xff] 0.0
          %1087 = vst [vmem:[%s505 + $0xa8] sm:$0xff] 0.0
          %1088 = vst [vmem:[%s505 + $0xb0] sm:$0xff] 0.0
          %1089 = vst [vmem:[%s505 + $0xb8] sm:$0xff] 0.0
          %1090 = vst [vmem:[%s505 + $0xc0] sm:$0xff] 0.0
          %1091 = vst [vmem:[%s505 + $0xc8] sm:$0xff] 0.0
          %1092 = vst [vmem:[%s505 + $0xd0] sm:$0xff] 0.0
          %1093 = vst [vmem:[%s505 + $0xd8] sm:$0xff] 0.0
          %1094 = vst [vmem:[%s505 + $0xe0] sm:$0xff] 0.0
          %1095 = vst [vmem:[%s505 + $0xe8] sm:$0xff] 0.0
          %1096 = vst [vmem:[%s505 + $0xf0] sm:$0xff] 0.0
          %1097 = vst [vmem:[%s505 + $0xf8] sm:$0xff] 0.0
        $region84: #{tpu_custom_call.1} parent=55 // pred_fallthru
          _
        %v1098 = vld [vmem:[%s435] sm:$0xff]
        %v1099 = vld [vmem:[%s435 + $0x8] sm:$0xff]
        %v1100 = vld [vmem:[%s435 + $0x10] sm:$0xff]
        %v1101 = vld [vmem:[%s435 + $0x18] sm:$0xff]
        %v1102 = vld [vmem:[%s435 + $0x20] sm:$0xff]
        %v1103 = vld [vmem:[%s435 + $0x28] sm:$0xff]
        %v1104 = vld [vmem:[%s435 + $0x30] sm:$0xff]
        %v1105 = vld [vmem:[%s435 + $0x38] sm:$0xff]
        %v1106 = vld [vmem:[%s435 + $0x40] sm:$0xff]
        %v1107 = vld [vmem:[%s435 + $0x48] sm:$0xff]
        %v1108 = vld [vmem:[%s435 + $0x50] sm:$0xff]
        %v1109 = vld [vmem:[%s435 + $0x58] sm:$0xff]
        %v1110 = vld [vmem:[%s435 + $0x60] sm:$0xff]
        %v1111 = vld [vmem:[%s435 + $0x68] sm:$0xff]
        %v1112 = vld [vmem:[%s435 + $0x70] sm:$0xff]
        %v1113 = vld [vmem:[%s435 + $0x78] sm:$0xff]
        %v1114 = vld [vmem:[#allocation11] sm:$0xff]
        %v1115 = vld [vmem:[#allocation11 + $0x8] sm:$0xff]
        %v1116 = vld [vmem:[#allocation11 + $0x10] sm:$0xff]
        %v1117 = vld [vmem:[#allocation11 + $0x18] sm:$0xff]
        %v1118 = vld [vmem:[#allocation11 + $0x20] sm:$0xff]
        %v1119 = vld [vmem:[#allocation11 + $0x28] sm:$0xff]
        %v1120 = vld [vmem:[#allocation11 + $0x30] sm:$0xff]
        %v1121 = vld [vmem:[#allocation11 + $0x38] sm:$0xff]
        %v1122 = vld [vmem:[#allocation11 + $0x40] sm:$0xff]
        %v1123 = vld [vmem:[#allocation11 + $0x48] sm:$0xff]
        %v1124 = vld [vmem:[#allocation11 + $0x50] sm:$0xff]
        %v1125 = vld [vmem:[#allocation11 + $0x58] sm:$0xff]
        %v1126 = vld [vmem:[#allocation11 + $0x60] sm:$0xff]
        %v1127 = vld [vmem:[#allocation11 + $0x68] sm:$0xff]
        %v1128 = vld [vmem:[#allocation11 + $0x70] sm:$0xff]
        %v1129 = vld [vmem:[#allocation11 + $0x78] sm:$0xff]
        %v1130 = vld [vmem:[#allocation11 + $0x80] sm:$0xff]
        %v1131 = vld [vmem:[#allocation11 + $0x88] sm:$0xff]
        %v1132 = vld [vmem:[#allocation11 + $0x90] sm:$0xff]
        %v1133 = vld [vmem:[#allocation11 + $0x98] sm:$0xff]
        %v1134 = vld [vmem:[#allocation11 + $0xa0] sm:$0xff]
        %v1135 = vld [vmem:[#allocation11 + $0xa8] sm:$0xff]
        %v1136 = vld [vmem:[#allocation11 + $0xb0] sm:$0xff]
        %v1137 = vld [vmem:[#allocation11 + $0xb8] sm:$0xff]
        %v1138 = vld [vmem:[#allocation11 + $0xc0] sm:$0xff]
        %v1139 = vld [vmem:[#allocation11 + $0xc8] sm:$0xff]
        %v1140 = vld [vmem:[#allocation11 + $0xd0] sm:$0xff]
        %v1141 = vld [vmem:[#allocation11 + $0xd8] sm:$0xff]
        %v1142 = vld [vmem:[#allocation11 + $0xe0] sm:$0xff]
        %v1143 = vld [vmem:[#allocation11 + $0xe8] sm:$0xff]
        %v1144 = vld [vmem:[#allocation11 + $0xf0] sm:$0xff]
        %v1145 = vld [vmem:[#allocation11 + $0xf8] sm:$0xff]
        %v1146 = vld [vmem:[%s7] sm:$0x3]
        %v1148 = vperm.slane %v1146, 0
        %v1149 = vperm.slane %v1146, 1
        %v1168 = vunpack.c.l.b16 %v1098
        %v1169 = vunpack.c.h.b16 %v1098
        %v1170 = vunpack.c.l.b16 %v1099
        %v1171 = vunpack.c.h.b16 %v1099
        %v1172 = vunpack.c.l.b16 %v1100
        %v1173 = vunpack.c.h.b16 %v1100
        %v1174 = vunpack.c.l.b16 %v1101
        %v1175 = vunpack.c.h.b16 %v1101
        %v1176 = vunpack.c.l.b16 %v1102
        %v1177 = vunpack.c.h.b16 %v1102
        %v1178 = vunpack.c.l.b16 %v1103
        %v1179 = vunpack.c.h.b16 %v1103
        %v1180 = vunpack.c.l.b16 %v1104
        %v1181 = vunpack.c.h.b16 %v1104
        %v1182 = vunpack.c.l.b16 %v1105
        %v1183 = vunpack.c.h.b16 %v1105
        %v1184 = vunpack.c.l.b16 %v1106
        %v1185 = vunpack.c.h.b16 %v1106
        %v1186 = vunpack.c.l.b16 %v1107
        %v1187 = vunpack.c.h.b16 %v1107
        %v1188 = vunpack.c.l.b16 %v1108
        %v1189 = vunpack.c.h.b16 %v1108
        %v1190 = vunpack.c.l.b16 %v1109
        %v1191 = vunpack.c.h.b16 %v1109
        %v1192 = vunpack.c.l.b16 %v1110
        %v1193 = vunpack.c.h.b16 %v1110
        %v1194 = vunpack.c.l.b16 %v1111
        %v1195 = vunpack.c.h.b16 %v1111
        %v1196 = vunpack.c.l.b16 %v1112
        %v1197 = vunpack.c.h.b16 %v1112
        %v1198 = vunpack.c.l.b16 %v1113
        %v1199 = vunpack.c.h.b16 %v1113
        %v1200 = vpack.c.b16 %v1170, %v1168
        %v1201 = vpack.c.b16 %v1171, %v1169
        %v1202 = vpack.c.b16 %v1174, %v1172
        %v1203 = vpack.c.b16 %v1175, %v1173
        %v1204 = vpack.c.b16 %v1178, %v1176
        %v1205 = vpack.c.b16 %v1179, %v1177
        %v1206 = vpack.c.b16 %v1182, %v1180
        %v1207 = vpack.c.b16 %v1183, %v1181
        %v1208 = vpack.c.b16 %v1186, %v1184
        %v1209 = vpack.c.b16 %v1187, %v1185
        %v1210 = vpack.c.b16 %v1190, %v1188
        %v1211 = vpack.c.b16 %v1191, %v1189
        %v1212 = vpack.c.b16 %v1194, %v1192
        %v1213 = vpack.c.b16 %v1195, %v1193
        %v1214 = vpack.c.b16 %v1198, %v1196
        %v1215 = vpack.c.b16 %v1199, %v1197
        %v1264 = vunpack.c.l.b16 %v1114
        %v1265 = vunpack.c.h.b16 %v1114
        %v1266 = vunpack.c.l.b16 %v1115
        %v1267 = vunpack.c.h.b16 %v1115
        %v1268 = vunpack.c.l.b16 %v1116
        %v1269 = vunpack.c.h.b16 %v1116
        %v1270 = vunpack.c.l.b16 %v1117
        %v1271 = vunpack.c.h.b16 %v1117
        %v1272 = vunpack.c.l.b16 %v1118
        %v1273 = vunpack.c.h.b16 %v1118
        %v1274 = vunpack.c.l.b16 %v1119
        %v1275 = vunpack.c.h.b16 %v1119
        %v1276 = vunpack.c.l.b16 %v1120
        %v1277 = vunpack.c.h.b16 %v1120
        %v1278 = vunpack.c.l.b16 %v1121
        %v1279 = vunpack.c.h.b16 %v1121
        %v1280 = vunpack.c.l.b16 %v1122
        %v1281 = vunpack.c.h.b16 %v1122
        %v1282 = vunpack.c.l.b16 %v1123
        %v1283 = vunpack.c.h.b16 %v1123
        %v1284 = vunpack.c.l.b16 %v1124
        %v1285 = vunpack.c.h.b16 %v1124
        %v1286 = vunpack.c.l.b16 %v1125
        %v1287 = vunpack.c.h.b16 %v1125
        %v1288 = vunpack.c.l.b16 %v1126
        %v1289 = vunpack.c.h.b16 %v1126
        %v1290 = vunpack.c.l.b16 %v1127
        %v1291 = vunpack.c.h.b16 %v1127
        %v1292 = vunpack.c.l.b16 %v1128
        %v1293 = vunpack.c.h.b16 %v1128
        %v1294 = vunpack.c.l.b16 %v1129
        %v1295 = vunpack.c.h.b16 %v1129
        %v1296 = vunpack.c.l.b16 %v1130
        %v1297 = vunpack.c.h.b16 %v1130
        %v1298 = vunpack.c.l.b16 %v1131
        %v1299 = vunpack.c.h.b16 %v1131
        %v1300 = vunpack.c.l.b16 %v1132
        %v1301 = vunpack.c.h.b16 %v1132
        %v1302 = vunpack.c.l.b16 %v1133
        %v1303 = vunpack.c.h.b16 %v1133
        %v1304 = vunpack.c.l.b16 %v1134
        %v1305 = vunpack.c.h.b16 %v1134
        %v1306 = vunpack.c.l.b16 %v1135
        %v1307 = vunpack.c.h.b16 %v1135
        %v1308 = vunpack.c.l.b16 %v1136
        %v1309 = vunpack.c.h.b16 %v1136
        %v1310 = vunpack.c.l.b16 %v1137
        %v1311 = vunpack.c.h.b16 %v1137
        %v1312 = vunpack.c.l.b16 %v1138
        %v1313 = vunpack.c.h.b16 %v1138
        %v1314 = vunpack.c.l.b16 %v1139
        %v1315 = vunpack.c.h.b16 %v1139
        %v1316 = vunpack.c.l.b16 %v1140
        %v1317 = vunpack.c.h.b16 %v1140
        %v1318 = vunpack.c.l.b16 %v1141
        %v1319 = vunpack.c.h.b16 %v1141
        %v1320 = vunpack.c.l.b16 %v1142
        %v1321 = vunpack.c.h.b16 %v1142
        %v1322 = vunpack.c.l.b16 %v1143
        %v1323 = vunpack.c.h.b16 %v1143
        %v1324 = vunpack.c.l.b16 %v1144
        %v1325 = vunpack.c.h.b16 %v1144
        %v1326 = vunpack.c.l.b16 %v1145
        %v1327 = vunpack.c.h.b16 %v1145
        %v1328 = vpack.c.b16 %v1266, %v1264
        %v1329 = vpack.c.b16 %v1267, %v1265
        %v1330 = vpack.c.b16 %v1270, %v1268
        %v1331 = vpack.c.b16 %v1271, %v1269
        %v1332 = vpack.c.b16 %v1274, %v1272
        %v1333 = vpack.c.b16 %v1275, %v1273
        %v1334 = vpack.c.b16 %v1278, %v1276
        %v1335 = vpack.c.b16 %v1279, %v1277
        %v1336 = vpack.c.b16 %v1282, %v1280
        %v1337 = vpack.c.b16 %v1283, %v1281
        %v1338 = vpack.c.b16 %v1286, %v1284
        %v1339 = vpack.c.b16 %v1287, %v1285
        %v1340 = vpack.c.b16 %v1290, %v1288
        %v1341 = vpack.c.b16 %v1291, %v1289
        %v1342 = vpack.c.b16 %v1294, %v1292
        %v1343 = vpack.c.b16 %v1295, %v1293
        %v1344 = vpack.c.b16 %v1298, %v1296
        %v1345 = vpack.c.b16 %v1299, %v1297
        %v1346 = vpack.c.b16 %v1302, %v1300
        %v1347 = vpack.c.b16 %v1303, %v1301
        %v1348 = vpack.c.b16 %v1306, %v1304
        %v1349 = vpack.c.b16 %v1307, %v1305
        %v1350 = vpack.c.b16 %v1310, %v1308
        %v1351 = vpack.c.b16 %v1311, %v1309
        %v1352 = vpack.c.b16 %v1314, %v1312
        %v1353 = vpack.c.b16 %v1315, %v1313
        %v1354 = vpack.c.b16 %v1318, %v1316
        %v1355 = vpack.c.b16 %v1319, %v1317
        %v1356 = vpack.c.b16 %v1322, %v1320
        %v1357 = vpack.c.b16 %v1323, %v1321
        %v1358 = vpack.c.b16 %v1326, %v1324
        %v1359 = vpack.c.b16 %v1327, %v1325
        %1392 = vmatpush.bf16.msra.mxu0 %v1342
        %1393 = vmatpush.bf16.msra.mxu0 %v1340
        %1394 = vmatpush.bf16.msra.mxu0 %v1338
        %1395 = vmatpush.bf16.msra.mxu0 %v1336
        %1396 = vmatpush.bf16.msra.mxu0 %v1334
        %1397 = vmatpush.bf16.msra.mxu0 %v1332
        %1398 = vmatpush.bf16.msra.mxu0 %v1330
        %1399 = vmatpush.bf16.msra.mxu0 %v1328
        %1400 = vmatmul.bf16.gmra.mxu0 %v1200
        %v1401 = vpop.f32.mrf.mxu0
        %v1402 = vadd.f32 %v1148, %v1401
        %v1403 = vpop.f32.mrf.mxu0
        %v1404 = vadd.f32 %v1148, %v1403
        %1405 = vmatmul.bf16.gmra.mxu0 %v1202
        %v1406 = vpop.f32.mrf.mxu0
        %v1407 = vadd.f32 %v1148, %v1406
        %v1408 = vpop.f32.mrf.mxu0
        %v1409 = vadd.f32 %v1148, %v1408
        %1410 = vmatmul.bf16.gmra.mxu0 %v1204
        %v1411 = vpop.f32.mrf.mxu0
        %v1412 = vadd.f32 %v1148, %v1411
        %v1413 = vpop.f32.mrf.mxu0
        %v1414 = vadd.f32 %v1148, %v1413
        %1415 = vmatmul.bf16.gmra.mxu0 %v1206
        %v1416 = vpop.f32.mrf.mxu0
        %v1417 = vadd.f32 %v1148, %v1416
        %v1418 = vpop.f32.mrf.mxu0
        %v1419 = vadd.f32 %v1148, %v1418
        %1420 = vmatmul.bf16.gmra.mxu0 %v1208
        %v1421 = vpop.f32.mrf.mxu0
        %v1422 = vadd.f32 %v1148, %v1421
        %v1423 = vpop.f32.mrf.mxu0
        %v1424 = vadd.f32 %v1148, %v1423
        %1425 = vmatmul.bf16.gmra.mxu0 %v1210
        %v1426 = vpop.f32.mrf.mxu0
        %v1427 = vadd.f32 %v1148, %v1426
        %v1428 = vpop.f32.mrf.mxu0
        %v1429 = vadd.f32 %v1148, %v1428
        %1430 = vmatmul.bf16.gmra.mxu0 %v1212
        %v1431 = vpop.f32.mrf.mxu0
        %v1432 = vadd.f32 %v1148, %v1431
        %v1433 = vpop.f32.mrf.mxu0
        %v1434 = vadd.f32 %v1148, %v1433
        %1435 = vmatmul.bf16.gmra.mxu0 %v1214
        %v1436 = vpop.f32.mrf.mxu0
        %v1437 = vadd.f32 %v1148, %v1436
        %v1438 = vpop.f32.mrf.mxu0
        %v1439 = vadd.f32 %v1148, %v1438
        %1440 = vdwg.mxu0
        %1441 = vmatpush.bf16.msra.mxu0 %v1358
        %1442 = vmatpush.bf16.msra.mxu0 %v1356
        %1443 = vmatpush.bf16.msra.mxu0 %v1354
        %1444 = vmatpush.bf16.msra.mxu0 %v1352
        %1445 = vmatpush.bf16.msra.mxu0 %v1350
        %1446 = vmatpush.bf16.msra.mxu0 %v1348
        %1447 = vmatpush.bf16.msra.mxu0 %v1346
        %1448 = vmatpush.bf16.msra.mxu0 %v1344
        %1449 = vmatmul.bf16.gmra.mxu0 %v1201
        %v1450 = vpop.f32.mrf.mxu0
        %v1451 = vadd.f32 %v1402, %v1450
        %v1452 = vpop.f32.mrf.mxu0
        %v1453 = vadd.f32 %v1404, %v1452
        %1454 = vmatmul.bf16.gmra.mxu0 %v1203
        %v1455 = vpop.f32.mrf.mxu0
        %v1456 = vadd.f32 %v1407, %v1455
        %v1457 = vpop.f32.mrf.mxu0
        %v1458 = vadd.f32 %v1409, %v1457
        %1459 = vmatmul.bf16.gmra.mxu0 %v1205
        %v1460 = vpop.f32.mrf.mxu0
        %v1461 = vadd.f32 %v1412, %v1460
        %v1462 = vpop.f32.mrf.mxu0
        %v1463 = vadd.f32 %v1414, %v1462
        %1464 = vmatmul.bf16.gmra.mxu0 %v1207
        %v1465 = vpop.f32.mrf.mxu0
        %v1466 = vadd.f32 %v1417, %v1465
        %v1467 = vpop.f32.mrf.mxu0
        %v1468 = vadd.f32 %v1419, %v1467
        %1469 = vmatmul.bf16.gmra.mxu0 %v1209
        %v1470 = vpop.f32.mrf.mxu0
        %v1471 = vadd.f32 %v1422, %v1470
        %v1472 = vpop.f32.mrf.mxu0
        %v1473 = vadd.f32 %v1424, %v1472
        %1474 = vmatmul.bf16.gmra.mxu0 %v1211
        %v1475 = vpop.f32.mrf.mxu0
        %v1476 = vadd.f32 %v1427, %v1475
        %v1477 = vpop.f32.mrf.mxu0
        %v1478 = vadd.f32 %v1429, %v1477
        %1479 = vmatmul.bf16.gmra.mxu0 %v1213
        %v1480 = vpop.f32.mrf.mxu0
        %v1481 = vadd.f32 %v1432, %v1480
        %v1482 = vpop.f32.mrf.mxu0
        %v1483 = vadd.f32 %v1434, %v1482
        %1484 = vmatmul.bf16.gmra.mxu0 %v1215
        %v1485 = vpop.f32.mrf.mxu0
        %v1486 = vadd.f32 %v1437, %v1485
        %v1487 = vpop.f32.mrf.mxu0
        %v1488 = vadd.f32 %v1439, %v1487
        %1489 = vdwg.mxu0
        %1490 = vmatpush.bf16.msra.mxu0 %v1343
        %1491 = vmatpush.bf16.msra.mxu0 %v1341
        %1492 = vmatpush.bf16.msra.mxu0 %v1339
        %1493 = vmatpush.bf16.msra.mxu0 %v1337
        %1494 = vmatpush.bf16.msra.mxu0 %v1335
        %1495 = vmatpush.bf16.msra.mxu0 %v1333
        %1496 = vmatpush.bf16.msra.mxu0 %v1331
        %1497 = vmatpush.bf16.msra.mxu0 %v1329
        %1498 = vmatmul.bf16.gmra.mxu0 %v1200
        %v1499 = vpop.f32.mrf.mxu0
        %v1500 = vadd.f32 %v1149, %v1499
        %v1501 = vpop.f32.mrf.mxu0
        %v1502 = vadd.f32 %v1149, %v1501
        %1503 = vmatmul.bf16.gmra.mxu0 %v1202
        %v1504 = vpop.f32.mrf.mxu0
        %v1505 = vadd.f32 %v1149, %v1504
        %v1506 = vpop.f32.mrf.mxu0
        %v1507 = vadd.f32 %v1149, %v1506
        %1508 = vmatmul.bf16.gmra.mxu0 %v1204
        %v1509 = vpop.f32.mrf.mxu0
        %v1510 = vadd.f32 %v1149, %v1509
        %v1511 = vpop.f32.mrf.mxu0
        %v1512 = vadd.f32 %v1149, %v1511
        %1513 = vmatmul.bf16.gmra.mxu0 %v1206
        %v1514 = vpop.f32.mrf.mxu0
        %v1515 = vadd.f32 %v1149, %v1514
        %v1516 = vpop.f32.mrf.mxu0
        %v1517 = vadd.f32 %v1149, %v1516
        %1518 = vmatmul.bf16.gmra.mxu0 %v1208
        %v1519 = vpop.f32.mrf.mxu0
        %v1520 = vadd.f32 %v1149, %v1519
        %v1521 = vpop.f32.mrf.mxu0
        %v1522 = vadd.f32 %v1149, %v1521
        %1523 = vmatmul.bf16.gmra.mxu0 %v1210
        %v1524 = vpop.f32.mrf.mxu0
        %v1525 = vadd.f32 %v1149, %v1524
        %v1526 = vpop.f32.mrf.mxu0
        %v1527 = vadd.f32 %v1149, %v1526
        %1528 = vmatmul.bf16.gmra.mxu0 %v1212
        %v1529 = vpop.f32.mrf.mxu0
        %v1530 = vadd.f32 %v1149, %v1529
        %v1531 = vpop.f32.mrf.mxu0
        %v1532 = vadd.f32 %v1149, %v1531
        %1533 = vmatmul.bf16.gmra.mxu0 %v1214
        %v1534 = vpop.f32.mrf.mxu0
        %v1535 = vadd.f32 %v1149, %v1534
        %v1536 = vpop.f32.mrf.mxu0
        %v1537 = vadd.f32 %v1149, %v1536
        %1538 = vdwg.mxu0
        %1539 = vmatpush.bf16.msra.mxu0 %v1359
        %1540 = vmatpush.bf16.msra.mxu0 %v1357
        %1541 = vmatpush.bf16.msra.mxu0 %v1355
        %1542 = vmatpush.bf16.msra.mxu0 %v1353
        %1543 = vmatpush.bf16.msra.mxu0 %v1351
        %1544 = vmatpush.bf16.msra.mxu0 %v1349
        %1545 = vmatpush.bf16.msra.mxu0 %v1347
        %1546 = vmatpush.bf16.msra.mxu0 %v1345
        %1547 = vmatmul.bf16.gmra.mxu0 %v1201
        %v1548 = vpop.f32.mrf.mxu0
        %v1549 = vadd.f32 %v1500, %v1548
        %v1550 = vpop.f32.mrf.mxu0
        %v1551 = vadd.f32 %v1502, %v1550
        %1552 = vmatmul.bf16.gmra.mxu0 %v1203
        %v1553 = vpop.f32.mrf.mxu0
        %v1554 = vadd.f32 %v1505, %v1553
        %v1555 = vpop.f32.mrf.mxu0
        %v1556 = vadd.f32 %v1507, %v1555
        %1557 = vmatmul.bf16.gmra.mxu0 %v1205
        %v1558 = vpop.f32.mrf.mxu0
        %v1559 = vadd.f32 %v1510, %v1558
        %v1560 = vpop.f32.mrf.mxu0
        %v1561 = vadd.f32 %v1512, %v1560
        %1562 = vmatmul.bf16.gmra.mxu0 %v1207
        %v1563 = vpop.f32.mrf.mxu0
        %v1564 = vadd.f32 %v1515, %v1563
        %v1565 = vpop.f32.mrf.mxu0
        %v1566 = vadd.f32 %v1517, %v1565
        %1567 = vmatmul.bf16.gmra.mxu0 %v1209
        %v1568 = vpop.f32.mrf.mxu0
        %v1569 = vadd.f32 %v1520, %v1568
        %v1570 = vpop.f32.mrf.mxu0
        %v1571 = vadd.f32 %v1522, %v1570
        %1572 = vmatmul.bf16.gmra.mxu0 %v1211
        %v1573 = vpop.f32.mrf.mxu0
        %v1574 = vadd.f32 %v1525, %v1573
        %v1575 = vpop.f32.mrf.mxu0
        %v1576 = vadd.f32 %v1527, %v1575
        %1577 = vmatmul.bf16.gmra.mxu0 %v1213
        %v1578 = vpop.f32.mrf.mxu0
        %v1579 = vadd.f32 %v1530, %v1578
        %v1580 = vpop.f32.mrf.mxu0
        %v1581 = vadd.f32 %v1532, %v1580
        %1582 = vmatmul.bf16.gmra.mxu0 %v1215
        %v1583 = vpop.f32.mrf.mxu0
        %v1584 = vadd.f32 %v1535, %v1583
        %v1585 = vpop.f32.mrf.mxu0
        %v1586 = vadd.f32 %v1537, %v1585
        %1587 = vdwg.mxu0
        %v1588 = vpack.c.bf16 %v1549, %v1451
        %v1589 = vpack.c.bf16 %v1551, %v1453
        %v1590 = vpack.c.bf16 %v1554, %v1456
        %v1591 = vpack.c.bf16 %v1556, %v1458
        %v1592 = vpack.c.bf16 %v1559, %v1461
        %v1593 = vpack.c.bf16 %v1561, %v1463
        %v1594 = vpack.c.bf16 %v1564, %v1466
        %v1595 = vpack.c.bf16 %v1566, %v1468
        %v1596 = vpack.c.bf16 %v1569, %v1471
        %v1597 = vpack.c.bf16 %v1571, %v1473
        %v1598 = vpack.c.bf16 %v1574, %v1476
        %v1599 = vpack.c.bf16 %v1576, %v1478
        %v1600 = vpack.c.bf16 %v1579, %v1481
        %v1601 = vpack.c.bf16 %v1581, %v1483
        %v1602 = vpack.c.bf16 %v1584, %v1486
        %v1603 = vpack.c.bf16 %v1586, %v1488
        %v1604 = vld [vmem:[%s445] sm:$0xff]
        %v1605 = vld [vmem:[%s445 + $0x8] sm:$0xff]
        %v1606 = vld [vmem:[%s445 + $0x10] sm:$0xff]
        %v1607 = vld [vmem:[%s445 + $0x18] sm:$0xff]
        %v1608 = vld [vmem:[%s445 + $0x20] sm:$0xff]
        %v1609 = vld [vmem:[%s445 + $0x28] sm:$0xff]
        %v1610 = vld [vmem:[%s445 + $0x30] sm:$0xff]
        %v1611 = vld [vmem:[%s445 + $0x38] sm:$0xff]
        %v1612 = vld [vmem:[%s445 + $0x40] sm:$0xff]
        %v1613 = vld [vmem:[%s445 + $0x48] sm:$0xff]
        %v1614 = vld [vmem:[%s445 + $0x50] sm:$0xff]
        %v1615 = vld [vmem:[%s445 + $0x58] sm:$0xff]
        %v1616 = vld [vmem:[%s445 + $0x60] sm:$0xff]
        %v1617 = vld [vmem:[%s445 + $0x68] sm:$0xff]
        %v1618 = vld [vmem:[%s445 + $0x70] sm:$0xff]
        %v1619 = vld [vmem:[%s445 + $0x78] sm:$0xff]
        %v1620 = vld [vmem:[#allocation12] sm:$0xff]
        %v1621 = vld [vmem:[#allocation12 + $0x8] sm:$0xff]
        %v1622 = vld [vmem:[#allocation12 + $0x10] sm:$0xff]
        %v1623 = vld [vmem:[#allocation12 + $0x18] sm:$0xff]
        %v1624 = vld [vmem:[#allocation12 + $0x20] sm:$0xff]
        %v1625 = vld [vmem:[#allocation12 + $0x28] sm:$0xff]
        %v1626 = vld [vmem:[#allocation12 + $0x30] sm:$0xff]
        %v1627 = vld [vmem:[#allocation12 + $0x38] sm:$0xff]
        %v1628 = vld [vmem:[#allocation12 + $0x40] sm:$0xff]
        %v1629 = vld [vmem:[#allocation12 + $0x48] sm:$0xff]
        %v1630 = vld [vmem:[#allocation12 + $0x50] sm:$0xff]
        %v1631 = vld [vmem:[#allocation12 + $0x58] sm:$0xff]
        %v1632 = vld [vmem:[#allocation12 + $0x60] sm:$0xff]
        %v1633 = vld [vmem:[#allocation12 + $0x68] sm:$0xff]
        %v1634 = vld [vmem:[#allocation12 + $0x70] sm:$0xff]
        %v1635 = vld [vmem:[#allocation12 + $0x78] sm:$0xff]
        %v1636 = vld [vmem:[#allocation12 + $0x80] sm:$0xff]
        %v1637 = vld [vmem:[#allocation12 + $0x88] sm:$0xff]
        %v1638 = vld [vmem:[#allocation12 + $0x90] sm:$0xff]
        %v1639 = vld [vmem:[#allocation12 + $0x98] sm:$0xff]
        %v1640 = vld [vmem:[#allocation12 + $0xa0] sm:$0xff]
        %v1641 = vld [vmem:[#allocation12 + $0xa8] sm:$0xff]
        %v1642 = vld [vmem:[#allocation12 + $0xb0] sm:$0xff]
        %v1643 = vld [vmem:[#allocation12 + $0xb8] sm:$0xff]
        %v1644 = vld [vmem:[#allocation12 + $0xc0] sm:$0xff]
        %v1645 = vld [vmem:[#allocation12 + $0xc8] sm:$0xff]
        %v1646 = vld [vmem:[#allocation12 + $0xd0] sm:$0xff]
        %v1647 = vld [vmem:[#allocation12 + $0xd8] sm:$0xff]
        %v1648 = vld [vmem:[#allocation12 + $0xe0] sm:$0xff]
        %v1649 = vld [vmem:[#allocation12 + $0xe8] sm:$0xff]
        %v1650 = vld [vmem:[#allocation12 + $0xf0] sm:$0xff]
        %v1651 = vld [vmem:[#allocation12 + $0xf8] sm:$0xff]
        %v1652 = vld [vmem:[%s8] sm:$0x3]
        %v1654 = vperm.slane %v1652, 0
        %v1655 = vperm.slane %v1652, 1
        %v1674 = vunpack.c.l.b16 %v1604
        %v1675 = vunpack.c.h.b16 %v1604
        %v1676 = vunpack.c.l.b16 %v1605
        %v1677 = vunpack.c.h.b16 %v1605
        %v1678 = vunpack.c.l.b16 %v1606
        %v1679 = vunpack.c.h.b16 %v1606
        %v1680 = vunpack.c.l.b16 %v1607
        %v1681 = vunpack.c.h.b16 %v1607
        %v1682 = vunpack.c.l.b16 %v1608
        %v1683 = vunpack.c.h.b16 %v1608
        %v1684 = vunpack.c.l.b16 %v1609
        %v1685 = vunpack.c.h.b16 %v1609
        %v1686 = vunpack.c.l.b16 %v1610
        %v1687 = vunpack.c.h.b16 %v1610
        %v1688 = vunpack.c.l.b16 %v1611
        %v1689 = vunpack.c.h.b16 %v1611
        %v1690 = vunpack.c.l.b16 %v1612
        %v1691 = vunpack.c.h.b16 %v1612
        %v1692 = vunpack.c.l.b16 %v1613
        %v1693 = vunpack.c.h.b16 %v1613
        %v1694 = vunpack.c.l.b16 %v1614
        %v1695 = vunpack.c.h.b16 %v1614
        %v1696 = vunpack.c.l.b16 %v1615
        %v1697 = vunpack.c.h.b16 %v1615
        %v1698 = vunpack.c.l.b16 %v1616
        %v1699 = vunpack.c.h.b16 %v1616
        %v1700 = vunpack.c.l.b16 %v1617
        %v1701 = vunpack.c.h.b16 %v1617
        %v1702 = vunpack.c.l.b16 %v1618
        %v1703 = vunpack.c.h.b16 %v1618
        %v1704 = vunpack.c.l.b16 %v1619
        %v1705 = vunpack.c.h.b16 %v1619
        %v1706 = vpack.c.b16 %v1676, %v1674
        %v1707 = vpack.c.b16 %v1677, %v1675
        %v1708 = vpack.c.b16 %v1680, %v1678
        %v1709 = vpack.c.b16 %v1681, %v1679
        %v1710 = vpack.c.b16 %v1684, %v1682
        %v1711 = vpack.c.b16 %v1685, %v1683
        %v1712 = vpack.c.b16 %v1688, %v1686
        %v1713 = vpack.c.b16 %v1689, %v1687
        %v1714 = vpack.c.b16 %v1692, %v1690
        %v1715 = vpack.c.b16 %v1693, %v1691
        %v1716 = vpack.c.b16 %v1696, %v1694
        %v1717 = vpack.c.b16 %v1697, %v1695
        %v1718 = vpack.c.b16 %v1700, %v1698
        %v1719 = vpack.c.b16 %v1701, %v1699
        %v1720 = vpack.c.b16 %v1704, %v1702
        %v1721 = vpack.c.b16 %v1705, %v1703
        %v1770 = vunpack.c.l.b16 %v1620
        %v1771 = vunpack.c.h.b16 %v1620
        %v1772 = vunpack.c.l.b16 %v1621
        %v1773 = vunpack.c.h.b16 %v1621
        %v1774 = vunpack.c.l.b16 %v1622
        %v1775 = vunpack.c.h.b16 %v1622
        %v1776 = vunpack.c.l.b16 %v1623
        %v1777 = vunpack.c.h.b16 %v1623
        %v1778 = vunpack.c.l.b16 %v1624
        %v1779 = vunpack.c.h.b16 %v1624
        %v1780 = vunpack.c.l.b16 %v1625
        %v1781 = vunpack.c.h.b16 %v1625
        %v1782 = vunpack.c.l.b16 %v1626
        %v1783 = vunpack.c.h.b16 %v1626
        %v1784 = vunpack.c.l.b16 %v1627
        %v1785 = vunpack.c.h.b16 %v1627
        %v1786 = vunpack.c.l.b16 %v1628
        %v1787 = vunpack.c.h.b16 %v1628
        %v1788 = vunpack.c.l.b16 %v1629
        %v1789 = vunpack.c.h.b16 %v1629
        %v1790 = vunpack.c.l.b16 %v1630
        %v1791 = vunpack.c.h.b16 %v1630
        %v1792 = vunpack.c.l.b16 %v1631
        %v1793 = vunpack.c.h.b16 %v1631
        %v1794 = vunpack.c.l.b16 %v1632
        %v1795 = vunpack.c.h.b16 %v1632
        %v1796 = vunpack.c.l.b16 %v1633
        %v1797 = vunpack.c.h.b16 %v1633
        %v1798 = vunpack.c.l.b16 %v1634
        %v1799 = vunpack.c.h.b16 %v1634
        %v1800 = vunpack.c.l.b16 %v1635
        %v1801 = vunpack.c.h.b16 %v1635
        %v1802 = vunpack.c.l.b16 %v1636
        %v1803 = vunpack.c.h.b16 %v1636
        %v1804 = vunpack.c.l.b16 %v1637
        %v1805 = vunpack.c.h.b16 %v1637
        %v1806 = vunpack.c.l.b16 %v1638
        %v1807 = vunpack.c.h.b16 %v1638
        %v1808 = vunpack.c.l.b16 %v1639
        %v1809 = vunpack.c.h.b16 %v1639
        %v1810 = vunpack.c.l.b16 %v1640
        %v1811 = vunpack.c.h.b16 %v1640
        %v1812 = vunpack.c.l.b16 %v1641
        %v1813 = vunpack.c.h.b16 %v1641
        %v1814 = vunpack.c.l.b16 %v1642
        %v1815 = vunpack.c.h.b16 %v1642
        %v1816 = vunpack.c.l.b16 %v1643
        %v1817 = vunpack.c.h.b16 %v1643
        %v1818 = vunpack.c.l.b16 %v1644
        %v1819 = vunpack.c.h.b16 %v1644
        %v1820 = vunpack.c.l.b16 %v1645
        %v1821 = vunpack.c.h.b16 %v1645
        %v1822 = vunpack.c.l.b16 %v1646
        %v1823 = vunpack.c.h.b16 %v1646
        %v1824 = vunpack.c.l.b16 %v1647
        %v1825 = vunpack.c.h.b16 %v1647
        %v1826 = vunpack.c.l.b16 %v1648
        %v1827 = vunpack.c.h.b16 %v1648
        %v1828 = vunpack.c.l.b16 %v1649
        %v1829 = vunpack.c.h.b16 %v1649
        %v1830 = vunpack.c.l.b16 %v1650
        %v1831 = vunpack.c.h.b16 %v1650
        %v1832 = vunpack.c.l.b16 %v1651
        %v1833 = vunpack.c.h.b16 %v1651
        %v1834 = vpack.c.b16 %v1772, %v1770
        %v1835 = vpack.c.b16 %v1773, %v1771
        %v1836 = vpack.c.b16 %v1776, %v1774
        %v1837 = vpack.c.b16 %v1777, %v1775
        %v1838 = vpack.c.b16 %v1780, %v1778
        %v1839 = vpack.c.b16 %v1781, %v1779
        %v1840 = vpack.c.b16 %v1784, %v1782
        %v1841 = vpack.c.b16 %v1785, %v1783
        %v1842 = vpack.c.b16 %v1788, %v1786
        %v1843 = vpack.c.b16 %v1789, %v1787
        %v1844 = vpack.c.b16 %v1792, %v1790
        %v1845 = vpack.c.b16 %v1793, %v1791
        %v1846 = vpack.c.b16 %v1796, %v1794
        %v1847 = vpack.c.b16 %v1797, %v1795
        %v1848 = vpack.c.b16 %v1800, %v1798
        %v1849 = vpack.c.b16 %v1801, %v1799
        %v1850 = vpack.c.b16 %v1804, %v1802
        %v1851 = vpack.c.b16 %v1805, %v1803
        %v1852 = vpack.c.b16 %v1808, %v1806
        %v1853 = vpack.c.b16 %v1809, %v1807
        %v1854 = vpack.c.b16 %v1812, %v1810
        %v1855 = vpack.c.b16 %v1813, %v1811
        %v1856 = vpack.c.b16 %v1816, %v1814
        %v1857 = vpack.c.b16 %v1817, %v1815
        %v1858 = vpack.c.b16 %v1820, %v1818
        %v1859 = vpack.c.b16 %v1821, %v1819
        %v1860 = vpack.c.b16 %v1824, %v1822
        %v1861 = vpack.c.b16 %v1825, %v1823
        %v1862 = vpack.c.b16 %v1828, %v1826
        %v1863 = vpack.c.b16 %v1829, %v1827
        %v1864 = vpack.c.b16 %v1832, %v1830
        %v1865 = vpack.c.b16 %v1833, %v1831
        %1898 = vmatpush.bf16.msra.mxu0 %v1848
        %1899 = vmatpush.bf16.msra.mxu0 %v1846
        %1900 = vmatpush.bf16.msra.mxu0 %v1844
        %1901 = vmatpush.bf16.msra.mxu0 %v1842
        %1902 = vmatpush.bf16.msra.mxu0 %v1840
        %1903 = vmatpush.bf16.msra.mxu0 %v1838
        %1904 = vmatpush.bf16.msra.mxu0 %v1836
        %1905 = vmatpush.bf16.msra.mxu0 %v1834
        %1906 = vmatmul.bf16.gmra.mxu0 %v1706
        %v1907 = vpop.f32.mrf.mxu0
        %v1908 = vadd.f32 %v1654, %v1907
        %v1909 = vpop.f32.mrf.mxu0
        %v1910 = vadd.f32 %v1654, %v1909
        %1911 = vmatmul.bf16.gmra.mxu0 %v1708
        %v1912 = vpop.f32.mrf.mxu0
        %v1913 = vadd.f32 %v1654, %v1912
        %v1914 = vpop.f32.mrf.mxu0
        %v1915 = vadd.f32 %v1654, %v1914
        %1916 = vmatmul.bf16.gmra.mxu0 %v1710
        %v1917 = vpop.f32.mrf.mxu0
        %v1918 = vadd.f32 %v1654, %v1917
        %v1919 = vpop.f32.mrf.mxu0
        %v1920 = vadd.f32 %v1654, %v1919
        %1921 = vmatmul.bf16.gmra.mxu0 %v1712
        %v1922 = vpop.f32.mrf.mxu0
        %v1923 = vadd.f32 %v1654, %v1922
        %v1924 = vpop.f32.mrf.mxu0
        %v1925 = vadd.f32 %v1654, %v1924
        %1926 = vmatmul.bf16.gmra.mxu0 %v1714
        %v1927 = vpop.f32.mrf.mxu0
        %v1928 = vadd.f32 %v1654, %v1927
        %v1929 = vpop.f32.mrf.mxu0
        %v1930 = vadd.f32 %v1654, %v1929
        %1931 = vmatmul.bf16.gmra.mxu0 %v1716
        %v1932 = vpop.f32.mrf.mxu0
        %v1933 = vadd.f32 %v1654, %v1932
        %v1934 = vpop.f32.mrf.mxu0
        %v1935 = vadd.f32 %v1654, %v1934
        %1936 = vmatmul.bf16.gmra.mxu0 %v1718
        %v1937 = vpop.f32.mrf.mxu0
        %v1938 = vadd.f32 %v1654, %v1937
        %v1939 = vpop.f32.mrf.mxu0
        %v1940 = vadd.f32 %v1654, %v1939
        %1941 = vmatmul.bf16.gmra.mxu0 %v1720
        %v1942 = vpop.f32.mrf.mxu0
        %v1943 = vadd.f32 %v1654, %v1942
        %v1944 = vpop.f32.mrf.mxu0
        %v1945 = vadd.f32 %v1654, %v1944
        %1946 = vdwg.mxu0
        %1947 = vmatpush.bf16.msra.mxu0 %v1864
        %1948 = vmatpush.bf16.msra.mxu0 %v1862
        %1949 = vmatpush.bf16.msra.mxu0 %v1860
        %1950 = vmatpush.bf16.msra.mxu0 %v1858
        %1951 = vmatpush.bf16.msra.mxu0 %v1856
        %1952 = vmatpush.bf16.msra.mxu0 %v1854
        %1953 = vmatpush.bf16.msra.mxu0 %v1852
        %1954 = vmatpush.bf16.msra.mxu0 %v1850
        %1955 = vmatmul.bf16.gmra.mxu0 %v1707
        %v1956 = vpop.f32.mrf.mxu0
        %v1957 = vadd.f32 %v1908, %v1956
        %v1958 = vpop.f32.mrf.mxu0
        %v1959 = vadd.f32 %v1910, %v1958
        %1960 = vmatmul.bf16.gmra.mxu0 %v1709
        %v1961 = vpop.f32.mrf.mxu0
        %v1962 = vadd.f32 %v1913, %v1961
        %v1963 = vpop.f32.mrf.mxu0
        %v1964 = vadd.f32 %v1915, %v1963
        %1965 = vmatmul.bf16.gmra.mxu0 %v1711
        %v1966 = vpop.f32.mrf.mxu0
        %v1967 = vadd.f32 %v1918, %v1966
        %v1968 = vpop.f32.mrf.mxu0
        %v1969 = vadd.f32 %v1920, %v1968
        %1970 = vmatmul.bf16.gmra.mxu0 %v1713
        %v1971 = vpop.f32.mrf.mxu0
        %v1972 = vadd.f32 %v1923, %v1971
        %v1973 = vpop.f32.mrf.mxu0
        %v1974 = vadd.f32 %v1925, %v1973
        %1975 = vmatmul.bf16.gmra.mxu0 %v1715
        %v1976 = vpop.f32.mrf.mxu0
        %v1977 = vadd.f32 %v1928, %v1976
        %v1978 = vpop.f32.mrf.mxu0
        %v1979 = vadd.f32 %v1930, %v1978
        %1980 = vmatmul.bf16.gmra.mxu0 %v1717
        %v1981 = vpop.f32.mrf.mxu0
        %v1982 = vadd.f32 %v1933, %v1981
        %v1983 = vpop.f32.mrf.mxu0
        %v1984 = vadd.f32 %v1935, %v1983
        %1985 = vmatmul.bf16.gmra.mxu0 %v1719
        %v1986 = vpop.f32.mrf.mxu0
        %v1987 = vadd.f32 %v1938, %v1986
        %v1988 = vpop.f32.mrf.mxu0
        %v1989 = vadd.f32 %v1940, %v1988
        %1990 = vmatmul.bf16.gmra.mxu0 %v1721
        %v1991 = vpop.f32.mrf.mxu0
        %v1992 = vadd.f32 %v1943, %v1991
        %v1993 = vpop.f32.mrf.mxu0
        %v1994 = vadd.f32 %v1945, %v1993
        %1995 = vdwg.mxu0
        %1996 = vmatpush.bf16.msra.mxu0 %v1849
        %1997 = vmatpush.bf16.msra.mxu0 %v1847
        %1998 = vmatpush.bf16.msra.mxu0 %v1845
        %1999 = vmatpush.bf16.msra.mxu0 %v1843
        %2000 = vmatpush.bf16.msra.mxu0 %v1841
        %2001 = vmatpush.bf16.msra.mxu0 %v1839
        %2002 = vmatpush.bf16.msra.mxu0 %v1837
        %2003 = vmatpush.bf16.msra.mxu0 %v1835
        %2004 = vmatmul.bf16.gmra.mxu0 %v1706
        %v2005 = vpop.f32.mrf.mxu0
        %v2006 = vadd.f32 %v1655, %v2005
        %v2007 = vpop.f32.mrf.mxu0
        %v2008 = vadd.f32 %v1655, %v2007
        %2009 = vmatmul.bf16.gmra.mxu0 %v1708
        %v2010 = vpop.f32.mrf.mxu0
        %v2011 = vadd.f32 %v1655, %v2010
        %v2012 = vpop.f32.mrf.mxu0
        %v2013 = vadd.f32 %v1655, %v2012
        %2014 = vmatmul.bf16.gmra.mxu0 %v1710
        %v2015 = vpop.f32.mrf.mxu0
        %v2016 = vadd.f32 %v1655, %v2015
        %v2017 = vpop.f32.mrf.mxu0
        %v2018 = vadd.f32 %v1655, %v2017
        %2019 = vmatmul.bf16.gmra.mxu0 %v1712
        %v2020 = vpop.f32.mrf.mxu0
        %v2021 = vadd.f32 %v1655, %v2020
        %v2022 = vpop.f32.mrf.mxu0
        %v2023 = vadd.f32 %v1655, %v2022
        %2024 = vmatmul.bf16.gmra.mxu0 %v1714
        %v2025 = vpop.f32.mrf.mxu0
        %v2026 = vadd.f32 %v1655, %v2025
        %v2027 = vpop.f32.mrf.mxu0
        %v2028 = vadd.f32 %v1655, %v2027
        %2029 = vmatmul.bf16.gmra.mxu0 %v1716
        %v2030 = vpop.f32.mrf.mxu0
        %v2031 = vadd.f32 %v1655, %v2030
        %v2032 = vpop.f32.mrf.mxu0
        %v2033 = vadd.f32 %v1655, %v2032
        %2034 = vmatmul.bf16.gmra.mxu0 %v1718
        %v2035 = vpop.f32.mrf.mxu0
        %v2036 = vadd.f32 %v1655, %v2035
        %v2037 = vpop.f32.mrf.mxu0
        %v2038 = vadd.f32 %v1655, %v2037
        %2039 = vmatmul.bf16.gmra.mxu0 %v1720
        %v2040 = vpop.f32.mrf.mxu0
        %v2041 = vadd.f32 %v1655, %v2040
        %v2042 = vpop.f32.mrf.mxu0
        %v2043 = vadd.f32 %v1655, %v2042
        %2044 = vdwg.mxu0
        %2045 = vmatpush.bf16.msra.mxu0 %v1865
        %2046 = vmatpush.bf16.msra.mxu0 %v1863
        %2047 = vmatpush.bf16.msra.mxu0 %v1861
        %2048 = vmatpush.bf16.msra.mxu0 %v1859
        %2049 = vmatpush.bf16.msra.mxu0 %v1857
        %2050 = vmatpush.bf16.msra.mxu0 %v1855
        %2051 = vmatpush.bf16.msra.mxu0 %v1853
        %2052 = vmatpush.bf16.msra.mxu0 %v1851
        %2053 = vmatmul.bf16.gmra.mxu0 %v1707
        %v2054 = vpop.f32.mrf.mxu0
        %v2055 = vadd.f32 %v2006, %v2054
        %v2056 = vpop.f32.mrf.mxu0
        %v2057 = vadd.f32 %v2008, %v2056
        %2058 = vmatmul.bf16.gmra.mxu0 %v1709
        %v2059 = vpop.f32.mrf.mxu0
        %v2060 = vadd.f32 %v2011, %v2059
        %v2061 = vpop.f32.mrf.mxu0
        %v2062 = vadd.f32 %v2013, %v2061
        %2063 = vmatmul.bf16.gmra.mxu0 %v1711
        %v2064 = vpop.f32.mrf.mxu0
        %v2065 = vadd.f32 %v2016, %v2064
        %v2066 = vpop.f32.mrf.mxu0
        %v2067 = vadd.f32 %v2018, %v2066
        %2068 = vmatmul.bf16.gmra.mxu0 %v1713
        %v2069 = vpop.f32.mrf.mxu0
        %v2070 = vadd.f32 %v2021, %v2069
        %v2071 = vpop.f32.mrf.mxu0
        %v2072 = vadd.f32 %v2023, %v2071
        %2073 = vmatmul.bf16.gmra.mxu0 %v1715
        %v2074 = vpop.f32.mrf.mxu0
        %v2075 = vadd.f32 %v2026, %v2074
        %v2076 = vpop.f32.mrf.mxu0
        %v2077 = vadd.f32 %v2028, %v2076
        %2078 = vmatmul.bf16.gmra.mxu0 %v1717
        %v2079 = vpop.f32.mrf.mxu0
        %v2080 = vadd.f32 %v2031, %v2079
        %v2081 = vpop.f32.mrf.mxu0
        %v2082 = vadd.f32 %v2033, %v2081
        %2083 = vmatmul.bf16.gmra.mxu0 %v1719
        %v2084 = vpop.f32.mrf.mxu0
        %v2085 = vadd.f32 %v2036, %v2084
        %v2086 = vpop.f32.mrf.mxu0
        %v2087 = vadd.f32 %v2038, %v2086
        %2088 = vmatmul.bf16.gmra.mxu0 %v1721
        %v2089 = vpop.f32.mrf.mxu0
        %v2090 = vadd.f32 %v2041, %v2089
        %v2091 = vpop.f32.mrf.mxu0
        %v2092 = vadd.f32 %v2043, %v2091
        %2093 = vdwg.mxu0
        %v2094 = vpack.c.bf16 %v2055, %v1957
        %v2095 = vpack.c.bf16 %v2057, %v1959
        %v2096 = vpack.c.bf16 %v2060, %v1962
        %v2097 = vpack.c.bf16 %v2062, %v1964
        %v2098 = vpack.c.bf16 %v2065, %v1967
        %v2099 = vpack.c.bf16 %v2067, %v1969
        %v2100 = vpack.c.bf16 %v2070, %v1972
        %v2101 = vpack.c.bf16 %v2072, %v1974
        %v2102 = vpack.c.bf16 %v2075, %v1977
        %v2103 = vpack.c.bf16 %v2077, %v1979
        %v2104 = vpack.c.bf16 %v2080, %v1982
        %v2105 = vpack.c.bf16 %v2082, %v1984
        %v2106 = vpack.c.bf16 %v2085, %v1987
        %v2107 = vpack.c.bf16 %v2087, %v1989
        %v2108 = vpack.c.bf16 %v2090, %v1992
        %v2109 = vpack.c.bf16 %v2092, %v1994
        %v2110 = vld [vmem:[#allocation2] sm:$0xf]
        %v2111 = vld [vmem:[#allocation2 + $0x8] sm:$0xf]
        %v2112 = vld [vmem:[#allocation2 + $0x10] sm:$0xf]
        %v2113 = vld [vmem:[#allocation2 + $0x18] sm:$0xf]
        %v2114 = vld [vmem:[#allocation2 + $0x20] sm:$0xf]
        %v2115 = vld [vmem:[#allocation2 + $0x28] sm:$0xf]
        %v2116 = vld [vmem:[#allocation2 + $0x30] sm:$0xf]
        %v2117 = vld [vmem:[#allocation2 + $0x38] sm:$0xf]
        %v2118 = vld [vmem:[#allocation2 + $0x40] sm:$0xf]
        %v2119 = vld [vmem:[#allocation2 + $0x48] sm:$0xf]
        %v2120 = vld [vmem:[#allocation2 + $0x50] sm:$0xf]
        %v2121 = vld [vmem:[#allocation2 + $0x58] sm:$0xf]
        %v2122 = vld [vmem:[#allocation2 + $0x60] sm:$0xf]
        %v2123 = vld [vmem:[#allocation2 + $0x68] sm:$0xf]
        %v2124 = vld [vmem:[#allocation2 + $0x70] sm:$0xf]
        %v2125 = vld [vmem:[#allocation2 + $0x78] sm:$0xf]
        %v2142 = vunpack.c.l.b16 %v2110
        %v2143 = vunpack.c.l.b16 %v2111
        %v2144 = vunpack.c.l.b16 %v2112
        %v2145 = vunpack.c.l.b16 %v2113
        %v2146 = vunpack.c.l.b16 %v2114
        %v2147 = vunpack.c.l.b16 %v2115
        %v2148 = vunpack.c.l.b16 %v2116
        %v2149 = vunpack.c.l.b16 %v2117
        %v2150 = vunpack.c.l.b16 %v2118
        %v2151 = vunpack.c.l.b16 %v2119
        %v2152 = vunpack.c.l.b16 %v2120
        %v2153 = vunpack.c.l.b16 %v2121
        %v2154 = vunpack.c.l.b16 %v2122
        %v2155 = vunpack.c.l.b16 %v2123
        %v2156 = vunpack.c.l.b16 %v2124
        %v2157 = vunpack.c.l.b16 %v2125
        %v2158 = vpack.c.b16 %v2143, %v2142
        %v2159 = vpack.c.b16 %v2145, %v2144
        %v2160 = vpack.c.b16 %v2147, %v2146
        %v2161 = vpack.c.b16 %v2149, %v2148
        %v2162 = vpack.c.b16 %v2151, %v2150
        %v2163 = vpack.c.b16 %v2153, %v2152
        %v2164 = vpack.c.b16 %v2155, %v2154
        %v2165 = vpack.c.b16 %v2157, %v2156
        %v2190 = vunpack.c.l.b16 %v1588
        %v2191 = vunpack.c.l.b16 %v1589
        %v2192 = vunpack.c.l.b16 %v1590
        %v2193 = vunpack.c.l.b16 %v1591
        %v2194 = vunpack.c.l.b16 %v1592
        %v2195 = vunpack.c.l.b16 %v1593
        %v2196 = vunpack.c.l.b16 %v1594
        %v2197 = vunpack.c.l.b16 %v1595
        %v2198 = vunpack.c.l.b16 %v1596
        %v2199 = vunpack.c.l.b16 %v1597
        %v2200 = vunpack.c.l.b16 %v1598
        %v2201 = vunpack.c.l.b16 %v1599
        %v2202 = vunpack.c.l.b16 %v1600
        %v2203 = vunpack.c.l.b16 %v1601
        %v2204 = vunpack.c.l.b16 %v1602
        %v2205 = vunpack.c.l.b16 %v1603
        %v2206 = vpack.c.b16 %v2191, %v2190
        %v2207 = vpack.c.b16 %v2193, %v2192
        %v2208 = vpack.c.b16 %v2195, %v2194
        %v2209 = vpack.c.b16 %v2197, %v2196
        %v2210 = vpack.c.b16 %v2199, %v2198
        %v2211 = vpack.c.b16 %v2201, %v2200
        %v2212 = vpack.c.b16 %v2203, %v2202
        %v2213 = vpack.c.b16 %v2205, %v2204
        %2222 = vmatpush.bf16.xpose.msra.mxu0 %v2213
        %2223 = vmatpush.bf16.xpose.msra.mxu0 %v2212
        %2224 = vmatpush.bf16.xpose.msra.mxu0 %v2211
        %2225 = vmatpush.bf16.xpose.msra.mxu0 %v2210
        %2226 = vmatpush.bf16.xpose.msra.mxu0 %v2209
        %2227 = vmatpush.bf16.xpose.msra.mxu0 %v2208
        %2228 = vmatpush.bf16.xpose.msra.mxu0 %v2207
        %2229 = vmatpush.bf16.xpose.msra.mxu0 %v2206
        %2230 = vmatmul.bf16.gmra.mxu0 %v2158
        %v2231 = vpop.f32.mrf.mxu0
        %v2232 = vadd.f32 0.0, %v2231
        %v2233 = vpop.f32.mrf.mxu0
        %v2234 = vadd.f32 0.0, %v2233
        %2235 = vmatmul.bf16.gmra.mxu0 %v2159
        %v2236 = vpop.f32.mrf.mxu0
        %v2237 = vadd.f32 0.0, %v2236
        %v2238 = vpop.f32.mrf.mxu0
        %v2239 = vadd.f32 0.0, %v2238
        %2240 = vmatmul.bf16.gmra.mxu0 %v2160
        %v2241 = vpop.f32.mrf.mxu0
        %v2242 = vadd.f32 0.0, %v2241
        %v2243 = vpop.f32.mrf.mxu0
        %v2244 = vadd.f32 0.0, %v2243
        %2245 = vmatmul.bf16.gmra.mxu0 %v2161
        %v2246 = vpop.f32.mrf.mxu0
        %v2247 = vadd.f32 0.0, %v2246
        %v2248 = vpop.f32.mrf.mxu0
        %v2249 = vadd.f32 0.0, %v2248
        %2250 = vmatmul.bf16.gmra.mxu0 %v2162
        %v2251 = vpop.f32.mrf.mxu0
        %v2252 = vadd.f32 0.0, %v2251
        %v2253 = vpop.f32.mrf.mxu0
        %v2254 = vadd.f32 0.0, %v2253
        %2255 = vmatmul.bf16.gmra.mxu0 %v2163
        %v2256 = vpop.f32.mrf.mxu0
        %v2257 = vadd.f32 0.0, %v2256
        %v2258 = vpop.f32.mrf.mxu0
        %v2259 = vadd.f32 0.0, %v2258
        %2260 = vmatmul.bf16.gmra.mxu0 %v2164
        %v2261 = vpop.f32.mrf.mxu0
        %v2262 = vadd.f32 0.0, %v2261
        %v2263 = vpop.f32.mrf.mxu0
        %v2264 = vadd.f32 0.0, %v2263
        %2265 = vmatmul.bf16.gmra.mxu0 %v2165
        %v2266 = vpop.f32.mrf.mxu0
        %v2267 = vadd.f32 0.0, %v2266
        %v2268 = vpop.f32.mrf.mxu0
        %v2269 = vadd.f32 0.0, %v2268
        %2270 = vdwg.mxu0
        %v2271 = vmax.f32 %v2232, %v2242
        %v2272 = vmax.f32 %v2234, %v2244
        %v2273 = vmax.f32 %v2237, %v2247
        %v2274 = vmax.f32 %v2239, %v2249
        %v2275 = vmax.f32 %v2271, %v2252
        %v2276 = vmax.f32 %v2272, %v2254
        %v2277 = vmax.f32 %v2273, %v2257
        %v2278 = vmax.f32 %v2274, %v2259
        %v2279 = vmax.f32 %v2275, %v2262
        %v2280 = vmax.f32 %v2276, %v2264
        %v2281 = vmax.f32 %v2277, %v2267
        %v2282 = vmax.f32 %v2278, %v2269
        %v2283 = vmax.f32 %v2279, %v2280
        %v2284 = vmax.f32 %v2281, %v2282
        %v2285 = vmax.f32 %v2283, %v2284
        %v2286 = vrot.slane %v2285, 4
        %v2287 = vmax.f32 %v2285, %v2286
        %v2288 = vrot.slane %v2287, 2
        %v2289 = vmax.f32 %v2287, %v2288
        %v2290 = vrot.slane %v2289, 1
        %v2291 = vmax.f32 %v2289, %v2290
        %v2292 = vsub.f32 %v2232, %v2291
        %v2293 = vsub.f32 %v2234, %v2291
        %v2294 = vsub.f32 %v2237, %v2291
        %v2295 = vsub.f32 %v2239, %v2291
        %v2296 = vsub.f32 %v2242, %v2291
        %v2297 = vsub.f32 %v2244, %v2291
        %v2298 = vsub.f32 %v2247, %v2291
        %v2299 = vsub.f32 %v2249, %v2291
        %v2300 = vsub.f32 %v2252, %v2291
        %v2301 = vsub.f32 %v2254, %v2291
        %v2302 = vsub.f32 %v2257, %v2291
        %v2303 = vsub.f32 %v2259, %v2291
        %v2304 = vsub.f32 %v2262, %v2291
        %v2305 = vsub.f32 %v2264, %v2291
        %v2306 = vsub.f32 %v2267, %v2291
        %v2307 = vsub.f32 %v2269, %v2291
        %v2308 = vmul.f32 %v2292, 1.442695
        %v2309 = vpow.pop %v2308
        %v2310 = vmul.f32 %v2293, 1.442695
        %v2311 = vpow.pop %v2310
        %v2312 = vmul.f32 %v2294, 1.442695
        %v2313 = vpow.pop %v2312
        %v2314 = vmul.f32 %v2295, 1.442695
        %v2315 = vpow.pop %v2314
        %v2316 = vmul.f32 %v2296, 1.442695
        %v2317 = vpow.pop %v2316
        %v2318 = vmul.f32 %v2297, 1.442695
        %v2319 = vpow.pop %v2318
        %v2320 = vmul.f32 %v2298, 1.442695
        %v2321 = vpow.pop %v2320
        %v2322 = vmul.f32 %v2299, 1.442695
        %v2323 = vpow.pop %v2322
        %v2324 = vmul.f32 %v2300, 1.442695
        %v2325 = vpow.pop %v2324
        %v2326 = vmul.f32 %v2301, 1.442695
        %v2327 = vpow.pop %v2326
        %v2328 = vmul.f32 %v2302, 1.442695
        %v2329 = vpow.pop %v2328
        %v2330 = vmul.f32 %v2303, 1.442695
        %v2331 = vpow.pop %v2330
        %v2332 = vmul.f32 %v2304, 1.442695
        %v2333 = vpow.pop %v2332
        %v2334 = vmul.f32 %v2305, 1.442695
        %v2335 = vpow.pop %v2334
        %v2336 = vmul.f32 %v2306, 1.442695
        %v2337 = vpow.pop %v2336
        %v2338 = vmul.f32 %v2307, 1.442695
        %v2339 = vpow.pop %v2338
        %v2340 = vadd.f32 %v2309, %v2311
        %v2341 = vadd.f32 %v2340, %v2313
        %v2342 = vadd.f32 %v2341, %v2315
        %v2343 = vadd.f32 %v2342, %v2317
        %v2344 = vadd.f32 %v2343, %v2319
        %v2345 = vadd.f32 %v2344, %v2321
        %v2346 = vadd.f32 %v2345, %v2323
        %v2347 = vadd.f32 %v2346, %v2325
        %v2348 = vadd.f32 %v2347, %v2327
        %v2349 = vadd.f32 %v2348, %v2329
        %v2350 = vadd.f32 %v2349, %v2331
        %v2351 = vadd.f32 %v2350, %v2333
        %v2352 = vadd.f32 %v2351, %v2335
        %v2353 = vadd.f32 %v2352, %v2337
        %v2354 = vadd.f32 %v2353, %v2339
        %v2355 = vrot.slane %v2354, 4
        %v2356 = vadd.f32 %v2354, %v2355
        %v2357 = vrot.slane %v2356, 2
        %v2358 = vadd.f32 %v2356, %v2357
        %v2359 = vrot.slane %v2358, 1
        %v2360 = vadd.f32 %v2358, %v2359
        %v2361 = vrcp.pop %v2360
        %v2362 = vmul.f32 %v2309, %v2361
        %v2363 = vmul.f32 %v2311, %v2361
        %v2364 = vmul.f32 %v2313, %v2361
        %v2365 = vmul.f32 %v2315, %v2361
        %v2366 = vmul.f32 %v2317, %v2361
        %v2367 = vmul.f32 %v2319, %v2361
        %v2368 = vmul.f32 %v2321, %v2361
        %v2369 = vmul.f32 %v2323, %v2361
        %v2370 = vmul.f32 %v2325, %v2361
        %v2371 = vmul.f32 %v2327, %v2361
        %v2372 = vmul.f32 %v2329, %v2361
        %v2373 = vmul.f32 %v2331, %v2361
        %v2374 = vmul.f32 %v2333, %v2361
        %v2375 = vmul.f32 %v2335, %v2361
        %v2376 = vmul.f32 %v2337, %v2361
        %v2377 = vmul.f32 %v2339, %v2361
        %v2378 = vld [vmem:[%s505] sm:$0xff]
        %v2379 = vld [vmem:[%s505 + $0x10] sm:$0xff]
        %v2380 = vld [vmem:[%s505 + $0x20] sm:$0xff]
        %v2381 = vld [vmem:[%s505 + $0x30] sm:$0xff]
        %v2382 = vld [vmem:[%s505 + $0x40] sm:$0xff]
        %v2383 = vld [vmem:[%s505 + $0x50] sm:$0xff]
        %v2384 = vld [vmem:[%s505 + $0x60] sm:$0xff]
        %v2385 = vld [vmem:[%s505 + $0x70] sm:$0xff]
        %v2386 = vld [vmem:[%s505 + $0x80] sm:$0xff]
        %v2387 = vld [vmem:[%s505 + $0x90] sm:$0xff]
        %v2388 = vld [vmem:[%s505 + $0xa0] sm:$0xff]
        %v2389 = vld [vmem:[%s505 + $0xb0] sm:$0xff]
        %v2390 = vld [vmem:[%s505 + $0xc0] sm:$0xff]
        %v2391 = vld [vmem:[%s505 + $0xd0] sm:$0xff]
        %v2392 = vld [vmem:[%s505 + $0xe0] sm:$0xff]
        %v2393 = vld [vmem:[%s505 + $0xf0] sm:$0xff]
        %v2394 = vpack.c.bf16 %v2363, %v2362
        %v2395 = vpack.c.bf16 %v2365, %v2364
        %v2396 = vpack.c.bf16 %v2367, %v2366
        %v2397 = vpack.c.bf16 %v2369, %v2368
        %v2398 = vpack.c.bf16 %v2371, %v2370
        %v2399 = vpack.c.bf16 %v2373, %v2372
        %v2400 = vpack.c.bf16 %v2375, %v2374
        %v2401 = vpack.c.bf16 %v2377, %v2376
        %v2418 = vunpack.c.l.b16 %v2094
        %v2419 = vunpack.c.l.b16 %v2095
        %v2420 = vunpack.c.l.b16 %v2096
        %v2421 = vunpack.c.l.b16 %v2097
        %v2422 = vunpack.c.l.b16 %v2098
        %v2423 = vunpack.c.l.b16 %v2099
        %v2424 = vunpack.c.l.b16 %v2100
        %v2425 = vunpack.c.l.b16 %v2101
        %v2426 = vunpack.c.l.b16 %v2102
        %v2427 = vunpack.c.l.b16 %v2103
        %v2428 = vunpack.c.l.b16 %v2104
        %v2429 = vunpack.c.l.b16 %v2105
        %v2430 = vunpack.c.l.b16 %v2106
        %v2431 = vunpack.c.l.b16 %v2107
        %v2432 = vunpack.c.l.b16 %v2108
        %v2433 = vunpack.c.l.b16 %v2109
        %v2434 = vpack.c.b16 %v2419, %v2418
        %v2435 = vpack.c.b16 %v2421, %v2420
        %v2436 = vpack.c.b16 %v2423, %v2422
        %v2437 = vpack.c.b16 %v2425, %v2424
        %v2438 = vpack.c.b16 %v2427, %v2426
        %v2439 = vpack.c.b16 %v2429, %v2428
        %v2440 = vpack.c.b16 %v2431, %v2430
        %v2441 = vpack.c.b16 %v2433, %v2432
        %2450 = vmatpush.bf16.msra.mxu0 %v2441
        %2451 = vmatpush.bf16.msra.mxu0 %v2440
        %2452 = vmatpush.bf16.msra.mxu0 %v2439
        %2453 = vmatpush.bf16.msra.mxu0 %v2438
        %2454 = vmatpush.bf16.msra.mxu0 %v2437
        %2455 = vmatpush.bf16.msra.mxu0 %v2436
        %2456 = vmatpush.bf16.msra.mxu0 %v2435
        %2457 = vmatpush.bf16.msra.mxu0 %v2434
        %2458 = vmatmul.bf16.gmra.mxu0 %v2394
        %v2459 = vpop.f32.mrf.mxu0
        %v2460 = vadd.f32 0.0, %v2459
        %v2461 = vpop.f32.mrf.mxu0
        %v2462 = vadd.f32 0.0, %v2461
        %2463 = vmatmul.bf16.gmra.mxu0 %v2395
        %v2464 = vpop.f32.mrf.mxu0
        %v2465 = vadd.f32 0.0, %v2464
        %v2466 = vpop.f32.mrf.mxu0
        %v2467 = vadd.f32 0.0, %v2466
        %2468 = vmatmul.bf16.gmra.mxu0 %v2396
        %v2469 = vpop.f32.mrf.mxu0
        %v2470 = vadd.f32 0.0, %v2469
        %v2471 = vpop.f32.mrf.mxu0
        %v2472 = vadd.f32 0.0, %v2471
        %2473 = vmatmul.bf16.gmra.mxu0 %v2397
        %v2474 = vpop.f32.mrf.mxu0
        %v2475 = vadd.f32 0.0, %v2474
        %v2476 = vpop.f32.mrf.mxu0
        %v2477 = vadd.f32 0.0, %v2476
        %2478 = vmatmul.bf16.gmra.mxu0 %v2398
        %v2479 = vpop.f32.mrf.mxu0
        %v2480 = vadd.f32 0.0, %v2479
        %v2481 = vpop.f32.mrf.mxu0
        %v2482 = vadd.f32 0.0, %v2481
        %2483 = vmatmul.bf16.gmra.mxu0 %v2399
        %v2484 = vpop.f32.mrf.mxu0
        %v2485 = vadd.f32 0.0, %v2484
        %v2486 = vpop.f32.mrf.mxu0
        %v2487 = vadd.f32 0.0, %v2486
        %2488 = vmatmul.bf16.gmra.mxu0 %v2400
        %v2489 = vpop.f32.mrf.mxu0
        %v2490 = vadd.f32 0.0, %v2489
        %v2491 = vpop.f32.mrf.mxu0
        %v2492 = vadd.f32 0.0, %v2491
        %2493 = vmatmul.bf16.gmra.mxu0 %v2401
        %v2494 = vpop.f32.mrf.mxu0
        %v2495 = vadd.f32 0.0, %v2494
        %v2496 = vpop.f32.mrf.mxu0
        %v2497 = vadd.f32 0.0, %v2496
        %2498 = vdwg.mxu0
        %v2499 = vadd.f32 %v2378, %v2460
        %v2500 = vadd.f32 %v2379, %v2462
        %v2501 = vadd.f32 %v2380, %v2465
        %v2502 = vadd.f32 %v2381, %v2467
        %v2503 = vadd.f32 %v2382, %v2470
        %v2504 = vadd.f32 %v2383, %v2472
        %v2505 = vadd.f32 %v2384, %v2475
        %v2506 = vadd.f32 %v2385, %v2477
        %v2507 = vadd.f32 %v2386, %v2480
        %v2508 = vadd.f32 %v2387, %v2482
        %v2509 = vadd.f32 %v2388, %v2485
        %v2510 = vadd.f32 %v2389, %v2487
        %v2511 = vadd.f32 %v2390, %v2490
        %v2512 = vadd.f32 %v2391, %v2492
        %v2513 = vadd.f32 %v2392, %v2495
        %v2514 = vadd.f32 %v2393, %v2497
        %2515 = vst [vmem:[%s505] sm:$0xff] %v2499
        %2516 = vst [vmem:[%s505 + $0x10] sm:$0xff] %v2500
        %2517 = vst [vmem:[%s505 + $0x20] sm:$0xff] %v2501
        %2518 = vst [vmem:[%s505 + $0x30] sm:$0xff] %v2502
        %2519 = vst [vmem:[%s505 + $0x40] sm:$0xff] %v2503
        %2520 = vst [vmem:[%s505 + $0x50] sm:$0xff] %v2504
        %2521 = vst [vmem:[%s505 + $0x60] sm:$0xff] %v2505
        %2522 = vst [vmem:[%s505 + $0x70] sm:$0xff] %v2506
        %2523 = vst [vmem:[%s505 + $0x80] sm:$0xff] %v2507
        %2524 = vst [vmem:[%s505 + $0x90] sm:$0xff] %v2508
        %2525 = vst [vmem:[%s505 + $0xa0] sm:$0xff] %v2509
        %2526 = vst [vmem:[%s505 + $0xb0] sm:$0xff] %v2510
        %2527 = vst [vmem:[%s505 + $0xc0] sm:$0xff] %v2511
        %2528 = vst [vmem:[%s505 + $0xd0] sm:$0xff] %v2512
        %2529 = vst [vmem:[%s505 + $0xe0] sm:$0xff] %v2513
        %2530 = vst [vmem:[%s505 + $0xf0] sm:$0xff] %v2514
        %v2531 = vld [vmem:[#allocation2 + $0x4] sm:$0xf]
        %v2532 = vld [vmem:[#allocation2 + $0xc] sm:$0xf]
        %v2533 = vld [vmem:[#allocation2 + $0x14] sm:$0xf]
        %v2534 = vld [vmem:[#allocation2 + $0x1c] sm:$0xf]
        %v2535 = vld [vmem:[#allocation2 + $0x24] sm:$0xf]
        %v2536 = vld [vmem:[#allocation2 + $0x2c] sm:$0xf]
        %v2537 = vld [vmem:[#allocation2 + $0x34] sm:$0xf]
        %v2538 = vld [vmem:[#allocation2 + $0x3c] sm:$0xf]
        %v2539 = vld [vmem:[#allocation2 + $0x44] sm:$0xf]
        %v2540 = vld [vmem:[#allocation2 + $0x4c] sm:$0xf]
        %v2541 = vld [vmem:[#allocation2 + $0x54] sm:$0xf]
        %v2542 = vld [vmem:[#allocation2 + $0x5c] sm:$0xf]
        %v2543 = vld [vmem:[#allocation2 + $0x64] sm:$0xf]
        %v2544 = vld [vmem:[#allocation2 + $0x6c] sm:$0xf]
        %v2545 = vld [vmem:[#allocation2 + $0x74] sm:$0xf]
        %v2546 = vld [vmem:[#allocation2 + $0x7c] sm:$0xf]
        %v2563 = vunpack.c.l.b16 %v2531
        %v2564 = vunpack.c.l.b16 %v2532
        %v2565 = vunpack.c.l.b16 %v2533
        %v2566 = vunpack.c.l.b16 %v2534
        %v2567 = vunpack.c.l.b16 %v2535
        %v2568 = vunpack.c.l.b16 %v2536
        %v2569 = vunpack.c.l.b16 %v2537
        %v2570 = vunpack.c.l.b16 %v2538
        %v2571 = vunpack.c.l.b16 %v2539
        %v2572 = vunpack.c.l.b16 %v2540
        %v2573 = vunpack.c.l.b16 %v2541
        %v2574 = vunpack.c.l.b16 %v2542
        %v2575 = vunpack.c.l.b16 %v2543
        %v2576 = vunpack.c.l.b16 %v2544
        %v2577 = vunpack.c.l.b16 %v2545
        %v2578 = vunpack.c.l.b16 %v2546
        %v2579 = vpack.c.b16 %v2564, %v2563
        %v2580 = vpack.c.b16 %v2566, %v2565
        %v2581 = vpack.c.b16 %v2568, %v2567
        %v2582 = vpack.c.b16 %v2570, %v2569
        %v2583 = vpack.c.b16 %v2572, %v2571
        %v2584 = vpack.c.b16 %v2574, %v2573
        %v2585 = vpack.c.b16 %v2576, %v2575
        %v2586 = vpack.c.b16 %v2578, %v2577
        %v2595 = vunpack.c.h.b16 %v1588
        %v2596 = vunpack.c.h.b16 %v1589
        %v2597 = vunpack.c.h.b16 %v1590
        %v2598 = vunpack.c.h.b16 %v1591
        %v2599 = vunpack.c.h.b16 %v1592
        %v2600 = vunpack.c.h.b16 %v1593
        %v2601 = vunpack.c.h.b16 %v1594
        %v2602 = vunpack.c.h.b16 %v1595
        %v2603 = vunpack.c.h.b16 %v1596
        %v2604 = vunpack.c.h.b16 %v1597
        %v2605 = vunpack.c.h.b16 %v1598
        %v2606 = vunpack.c.h.b16 %v1599
        %v2607 = vunpack.c.h.b16 %v1600
        %v2608 = vunpack.c.h.b16 %v1601
        %v2609 = vunpack.c.h.b16 %v1602
        %v2610 = vunpack.c.h.b16 %v1603
        %v2611 = vpack.c.b16 %v2596, %v2595
        %v2612 = vpack.c.b16 %v2598, %v2597
        %v2613 = vpack.c.b16 %v2600, %v2599
        %v2614 = vpack.c.b16 %v2602, %v2601
        %v2615 = vpack.c.b16 %v2604, %v2603
        %v2616 = vpack.c.b16 %v2606, %v2605
        %v2617 = vpack.c.b16 %v2608, %v2607
        %v2618 = vpack.c.b16 %v2610, %v2609
        %2627 = vmatpush.bf16.xpose.msra.mxu0 %v2618
        %2628 = vmatpush.bf16.xpose.msra.mxu0 %v2617
        %2629 = vmatpush.bf16.xpose.msra.mxu0 %v2616
        %2630 = vmatpush.bf16.xpose.msra.mxu0 %v2615
        %2631 = vmatpush.bf16.xpose.msra.mxu0 %v2614
        %2632 = vmatpush.bf16.xpose.msra.mxu0 %v2613
        %2633 = vmatpush.bf16.xpose.msra.mxu0 %v2612
        %2634 = vmatpush.bf16.xpose.msra.mxu0 %v2611
        %2635 = vmatmul.bf16.gmra.mxu0 %v2579
        %v2636 = vpop.f32.mrf.mxu0
        %v2637 = vadd.f32 0.0, %v2636
        %v2638 = vpop.f32.mrf.mxu0
        %v2639 = vadd.f32 0.0, %v2638
        %2640 = vmatmul.bf16.gmra.mxu0 %v2580
        %v2641 = vpop.f32.mrf.mxu0
        %v2642 = vadd.f32 0.0, %v2641
        %v2643 = vpop.f32.mrf.mxu0
        %v2644 = vadd.f32 0.0, %v2643
        %2645 = vmatmul.bf16.gmra.mxu0 %v2581
        %v2646 = vpop.f32.mrf.mxu0
        %v2647 = vadd.f32 0.0, %v2646
        %v2648 = vpop.f32.mrf.mxu0
        %v2649 = vadd.f32 0.0, %v2648
        %2650 = vmatmul.bf16.gmra.mxu0 %v2582
        %v2651 = vpop.f32.mrf.mxu0
        %v2652 = vadd.f32 0.0, %v2651
        %v2653 = vpop.f32.mrf.mxu0
        %v2654 = vadd.f32 0.0, %v2653
        %2655 = vmatmul.bf16.gmra.mxu0 %v2583
        %v2656 = vpop.f32.mrf.mxu0
        %v2657 = vadd.f32 0.0, %v2656
        %v2658 = vpop.f32.mrf.mxu0
        %v2659 = vadd.f32 0.0, %v2658
        %2660 = vmatmul.bf16.gmra.mxu0 %v2584
        %v2661 = vpop.f32.mrf.mxu0
        %v2662 = vadd.f32 0.0, %v2661
        %v2663 = vpop.f32.mrf.mxu0
        %v2664 = vadd.f32 0.0, %v2663
        %2665 = vmatmul.bf16.gmra.mxu0 %v2585
        %v2666 = vpop.f32.mrf.mxu0
        %v2667 = vadd.f32 0.0, %v2666
        %v2668 = vpop.f32.mrf.mxu0
        %v2669 = vadd.f32 0.0, %v2668
        %2670 = vmatmul.bf16.gmra.mxu0 %v2586
        %v2671 = vpop.f32.mrf.mxu0
        %v2672 = vadd.f32 0.0, %v2671
        %v2673 = vpop.f32.mrf.mxu0
        %v2674 = vadd.f32 0.0, %v2673
        %2675 = vdwg.mxu0
        %v2676 = vmax.f32 %v2637, %v2647
        %v2677 = vmax.f32 %v2639, %v2649
        %v2678 = vmax.f32 %v2642, %v2652
        %v2679 = vmax.f32 %v2644, %v2654
        %v2680 = vmax.f32 %v2676, %v2657
        %v2681 = vmax.f32 %v2677, %v2659
        %v2682 = vmax.f32 %v2678, %v2662
        %v2683 = vmax.f32 %v2679, %v2664
        %v2684 = vmax.f32 %v2680, %v2667
        %v2685 = vmax.f32 %v2681, %v2669
        %v2686 = vmax.f32 %v2682, %v2672
        %v2687 = vmax.f32 %v2683, %v2674
        %v2688 = vmax.f32 %v2684, %v2685
        %v2689 = vmax.f32 %v2686, %v2687
        %v2690 = vmax.f32 %v2688, %v2689
        %v2691 = vrot.slane %v2690, 4
        %v2692 = vmax.f32 %v2690, %v2691
        %v2693 = vrot.slane %v2692, 2
        %v2694 = vmax.f32 %v2692, %v2693
        %v2695 = vrot.slane %v2694, 1
        %v2696 = vmax.f32 %v2694, %v2695
        %v2697 = vsub.f32 %v2637, %v2696
        %v2698 = vsub.f32 %v2639, %v2696
        %v2699 = vsub.f32 %v2642, %v2696
        %v2700 = vsub.f32 %v2644, %v2696
        %v2701 = vsub.f32 %v2647, %v2696
        %v2702 = vsub.f32 %v2649, %v2696
        %v2703 = vsub.f32 %v2652, %v2696
        %v2704 = vsub.f32 %v2654, %v2696
        %v2705 = vsub.f32 %v2657, %v2696
        %v2706 = vsub.f32 %v2659, %v2696
        %v2707 = vsub.f32 %v2662, %v2696
        %v2708 = vsub.f32 %v2664, %v2696
        %v2709 = vsub.f32 %v2667, %v2696
        %v2710 = vsub.f32 %v2669, %v2696
        %v2711 = vsub.f32 %v2672, %v2696
        %v2712 = vsub.f32 %v2674, %v2696
        %v2713 = vmul.f32 %v2697, 1.442695
        %v2714 = vpow.pop %v2713
        %v2715 = vmul.f32 %v2698, 1.442695
        %v2716 = vpow.pop %v2715
        %v2717 = vmul.f32 %v2699, 1.442695
        %v2718 = vpow.pop %v2717
        %v2719 = vmul.f32 %v2700, 1.442695
        %v2720 = vpow.pop %v2719
        %v2721 = vmul.f32 %v2701, 1.442695
        %v2722 = vpow.pop %v2721
        %v2723 = vmul.f32 %v2702, 1.442695
        %v2724 = vpow.pop %v2723
        %v2725 = vmul.f32 %v2703, 1.442695
        %v2726 = vpow.pop %v2725
        %v2727 = vmul.f32 %v2704, 1.442695
        %v2728 = vpow.pop %v2727
        %v2729 = vmul.f32 %v2705, 1.442695
        %v2730 = vpow.pop %v2729
        %v2731 = vmul.f32 %v2706, 1.442695
        %v2732 = vpow.pop %v2731
        %v2733 = vmul.f32 %v2707, 1.442695
        %v2734 = vpow.pop %v2733
        %v2735 = vmul.f32 %v2708, 1.442695
        %v2736 = vpow.pop %v2735
        %v2737 = vmul.f32 %v2709, 1.442695
        %v2738 = vpow.pop %v2737
        %v2739 = vmul.f32 %v2710, 1.442695
        %v2740 = vpow.pop %v2739
        %v2741 = vmul.f32 %v2711, 1.442695
        %v2742 = vpow.pop %v2741
        %v2743 = vmul.f32 %v2712, 1.442695
        %v2744 = vpow.pop %v2743
        %v2745 = vadd.f32 %v2714, %v2716
        %v2746 = vadd.f32 %v2745, %v2718
        %v2747 = vadd.f32 %v2746, %v2720
        %v2748 = vadd.f32 %v2747, %v2722
        %v2749 = vadd.f32 %v2748, %v2724
        %v2750 = vadd.f32 %v2749, %v2726
        %v2751 = vadd.f32 %v2750, %v2728
        %v2752 = vadd.f32 %v2751, %v2730
        %v2753 = vadd.f32 %v2752, %v2732
        %v2754 = vadd.f32 %v2753, %v2734
        %v2755 = vadd.f32 %v2754, %v2736
        %v2756 = vadd.f32 %v2755, %v2738
        %v2757 = vadd.f32 %v2756, %v2740
        %v2758 = vadd.f32 %v2757, %v2742
        %v2759 = vadd.f32 %v2758, %v2744
        %v2760 = vrot.slane %v2759, 4
        %v2761 = vadd.f32 %v2759, %v2760
        %v2762 = vrot.slane %v2761, 2
        %v2763 = vadd.f32 %v2761, %v2762
        %v2764 = vrot.slane %v2763, 1
        %v2765 = vadd.f32 %v2763, %v2764
        %v2766 = vrcp.pop %v2765
        %v2767 = vmul.f32 %v2714, %v2766
        %v2768 = vmul.f32 %v2716, %v2766
        %v2769 = vmul.f32 %v2718, %v2766
        %v2770 = vmul.f32 %v2720, %v2766
        %v2771 = vmul.f32 %v2722, %v2766
        %v2772 = vmul.f32 %v2724, %v2766
        %v2773 = vmul.f32 %v2726, %v2766
        %v2774 = vmul.f32 %v2728, %v2766
        %v2775 = vmul.f32 %v2730, %v2766
        %v2776 = vmul.f32 %v2732, %v2766
        %v2777 = vmul.f32 %v2734, %v2766
        %v2778 = vmul.f32 %v2736, %v2766
        %v2779 = vmul.f32 %v2738, %v2766
        %v2780 = vmul.f32 %v2740, %v2766
        %v2781 = vmul.f32 %v2742, %v2766
        %v2782 = vmul.f32 %v2744, %v2766
        %v2783 = vld [vmem:[%s505 + $0x8] sm:$0xff]
        %v2784 = vld [vmem:[%s505 + $0x18] sm:$0xff]
        %v2785 = vld [vmem:[%s505 + $0x28] sm:$0xff]
        %v2786 = vld [vmem:[%s505 + $0x38] sm:$0xff]
        %v2787 = vld [vmem:[%s505 + $0x48] sm:$0xff]
        %v2788 = vld [vmem:[%s505 + $0x58] sm:$0xff]
        %v2789 = vld [vmem:[%s505 + $0x68] sm:$0xff]
        %v2790 = vld [vmem:[%s505 + $0x78] sm:$0xff]
        %v2791 = vld [vmem:[%s505 + $0x88] sm:$0xff]
        %v2792 = vld [vmem:[%s505 + $0x98] sm:$0xff]
        %v2793 = vld [vmem:[%s505 + $0xa8] sm:$0xff]
        %v2794 = vld [vmem:[%s505 + $0xb8] sm:$0xff]
        %v2795 = vld [vmem:[%s505 + $0xc8] sm:$0xff]
        %v2796 = vld [vmem:[%s505 + $0xd8] sm:$0xff]
        %v2797 = vld [vmem:[%s505 + $0xe8] sm:$0xff]
        %v2798 = vld [vmem:[%s505 + $0xf8] sm:$0xff]
        %v2799 = vpack.c.bf16 %v2768, %v2767
        %v2800 = vpack.c.bf16 %v2770, %v2769
        %v2801 = vpack.c.bf16 %v2772, %v2771
        %v2802 = vpack.c.bf16 %v2774, %v2773
        %v2803 = vpack.c.bf16 %v2776, %v2775
        %v2804 = vpack.c.bf16 %v2778, %v2777
        %v2805 = vpack.c.bf16 %v2780, %v2779
        %v2806 = vpack.c.bf16 %v2782, %v2781
        %v2807 = vunpack.c.h.b16 %v2094
        %v2808 = vunpack.c.h.b16 %v2095
        %v2809 = vunpack.c.h.b16 %v2096
        %v2810 = vunpack.c.h.b16 %v2097
        %v2811 = vunpack.c.h.b16 %v2098
        %v2812 = vunpack.c.h.b16 %v2099
        %v2813 = vunpack.c.h.b16 %v2100
        %v2814 = vunpack.c.h.b16 %v2101
        %v2815 = vunpack.c.h.b16 %v2102
        %v2816 = vunpack.c.h.b16 %v2103
        %v2817 = vunpack.c.h.b16 %v2104
        %v2818 = vunpack.c.h.b16 %v2105
        %v2819 = vunpack.c.h.b16 %v2106
        %v2820 = vunpack.c.h.b16 %v2107
        %v2821 = vunpack.c.h.b16 %v2108
        %v2822 = vunpack.c.h.b16 %v2109
        %v2823 = vpack.c.b16 %v2808, %v2807
        %v2824 = vpack.c.b16 %v2810, %v2809
        %v2825 = vpack.c.b16 %v2812, %v2811
        %v2826 = vpack.c.b16 %v2814, %v2813
        %v2827 = vpack.c.b16 %v2816, %v2815
        %v2828 = vpack.c.b16 %v2818, %v2817
        %v2829 = vpack.c.b16 %v2820, %v2819
        %v2830 = vpack.c.b16 %v2822, %v2821
        %2839 = vmatpush.bf16.msra.mxu0 %v2830
        %2840 = vmatpush.bf16.msra.mxu0 %v2829
        %2841 = vmatpush.bf16.msra.mxu0 %v2828
        %2842 = vmatpush.bf16.msra.mxu0 %v2827
        %2843 = vmatpush.bf16.msra.mxu0 %v2826
        %2844 = vmatpush.bf16.msra.mxu0 %v2825
        %2845 = vmatpush.bf16.msra.mxu0 %v2824
        %2846 = vmatpush.bf16.msra.mxu0 %v2823
        %2847 = vmatmul.bf16.gmra.mxu0 %v2799
        %v2848 = vpop.f32.mrf.mxu0
        %v2849 = vadd.f32 0.0, %v2848
        %v2850 = vpop.f32.mrf.mxu0
        %v2851 = vadd.f32 0.0, %v2850
        %2852 = vmatmul.bf16.gmra.mxu0 %v2800
        %v2853 = vpop.f32.mrf.mxu0
        %v2854 = vadd.f32 0.0, %v2853
        %v2855 = vpop.f32.mrf.mxu0
        %v2856 = vadd.f32 0.0, %v2855
        %2857 = vmatmul.bf16.gmra.mxu0 %v2801
        %v2858 = vpop.f32.mrf.mxu0
        %v2859 = vadd.f32 0.0, %v2858
        %v2860 = vpop.f32.mrf.mxu0
        %v2861 = vadd.f32 0.0, %v2860
        %2862 = vmatmul.bf16.gmra.mxu0 %v2802
        %v2863 = vpop.f32.mrf.mxu0
        %v2864 = vadd.f32 0.0, %v2863
        %v2865 = vpop.f32.mrf.mxu0
        %v2866 = vadd.f32 0.0, %v2865
        %2867 = vmatmul.bf16.gmra.mxu0 %v2803
        %v2868 = vpop.f32.mrf.mxu0
        %v2869 = vadd.f32 0.0, %v2868
        %v2870 = vpop.f32.mrf.mxu0
        %v2871 = vadd.f32 0.0, %v2870
        %2872 = vmatmul.bf16.gmra.mxu0 %v2804
        %v2873 = vpop.f32.mrf.mxu0
        %v2874 = vadd.f32 0.0, %v2873
        %v2875 = vpop.f32.mrf.mxu0
        %v2876 = vadd.f32 0.0, %v2875
        %2877 = vmatmul.bf16.gmra.mxu0 %v2805
        %v2878 = vpop.f32.mrf.mxu0
        %v2879 = vadd.f32 0.0, %v2878
        %v2880 = vpop.f32.mrf.mxu0
        %v2881 = vadd.f32 0.0, %v2880
        %2882 = vmatmul.bf16.gmra.mxu0 %v2806
        %v2883 = vpop.f32.mrf.mxu0
        %v2884 = vadd.f32 0.0, %v2883
        %v2885 = vpop.f32.mrf.mxu0
        %v2886 = vadd.f32 0.0, %v2885
        %2887 = vdwg.mxu0
        %v2888 = vadd.f32 %v2783, %v2849
        %v2889 = vadd.f32 %v2784, %v2851
        %v2890 = vadd.f32 %v2785, %v2854
        %v2891 = vadd.f32 %v2786, %v2856
        %v2892 = vadd.f32 %v2787, %v2859
        %v2893 = vadd.f32 %v2788, %v2861
        %v2894 = vadd.f32 %v2789, %v2864
        %v2895 = vadd.f32 %v2790, %v2866
        %v2896 = vadd.f32 %v2791, %v2869
        %v2897 = vadd.f32 %v2792, %v2871
        %v2898 = vadd.f32 %v2793, %v2874
        %v2899 = vadd.f32 %v2794, %v2876
        %v2900 = vadd.f32 %v2795, %v2879
        %v2901 = vadd.f32 %v2796, %v2881
        %v2902 = vadd.f32 %v2797, %v2884
        %v2903 = vadd.f32 %v2798, %v2886
        %2904 = vst [vmem:[%s505 + $0x8] sm:$0xff] %v2888
        %2905 = vst [vmem:[%s505 + $0x18] sm:$0xff] %v2889
        %2906 = vst [vmem:[%s505 + $0x28] sm:$0xff] %v2890
        %2907 = vst [vmem:[%s505 + $0x38] sm:$0xff] %v2891
        %2908 = vst [vmem:[%s505 + $0x48] sm:$0xff] %v2892
        %2909 = vst [vmem:[%s505 + $0x58] sm:$0xff] %v2893
        %2910 = vst [vmem:[%s505 + $0x68] sm:$0xff] %v2894
        %2911 = vst [vmem:[%s505 + $0x78] sm:$0xff] %v2895
        %2912 = vst [vmem:[%s505 + $0x88] sm:$0xff] %v2896
        %2913 = vst [vmem:[%s505 + $0x98] sm:$0xff] %v2897
        %2914 = vst [vmem:[%s505 + $0xa8] sm:$0xff] %v2898
        %2915 = vst [vmem:[%s505 + $0xb8] sm:$0xff] %v2899
        %2916 = vst [vmem:[%s505 + $0xc8] sm:$0xff] %v2900
        %2917 = vst [vmem:[%s505 + $0xd8] sm:$0xff] %v2901
        %2918 = vst [vmem:[%s505 + $0xe8] sm:$0xff] %v2902
        %2919 = vst [vmem:[%s505 + $0xf8] sm:$0xff] %v2903
        %s2920 = sand.u32 %s259, 1
        %s2921 = scalar_lea.sflag [#allocation5], %s2920
        %s2922 = sand.u32 %s259, 1
        %s2923 = smul.addr %s2922, 256
        %s2924 = scalar_lea.vmem [#allocation14], %s2923
        // Predicated region
        $region85: #{tpu_custom_call.1} parent=55 // pred_check
          %p2925 = pneg %p269
        $region86: #{tpu_custom_call.1} parent=55 // pred_check_branch
          %2927 = sbr.rel (%p2925) target = $region88
        $region87: #{tpu_custom_call.1} parent=55 // pred_region
          %2929 = vsyncadd %s2921, 0
          %s2930 = smul.addr %s35, 32
          %s2931 = smul.addr %s2930, 8
          %s2932 = scalar_lea.hbm %s9, %s2931
          %s2933 = sshll.u32 %s2924, 4
          %s2934 = int_to_ptr.vmem [resolvable:$true] %s2933
          %s2935 = sshll.u32 %s2932, 4
          %s2936 = int_to_ptr.hbm [resolvable:$true] %s2935
          %2941 = dma.vmem_to_hbm [thread:$0]  %s2934, 4096, %s2936, %s2921, 256, 256, 16
        $region88: #{tpu_custom_call.1} parent=55 // pred_fallthru
          _
      $region56: #{tpu_custom_call.1} parent=5 // pred_fallthru
        _
      %p2942 = scmp.le.s32.totalorder 2, %s26
      // Predicated region
      $region89: #{tpu_custom_call.1} parent=5 // pred_check
        %p2943 = pneg %p2942
      $region90: #{tpu_custom_call.1} parent=5 // pred_check_branch
        %2945 = sbr.rel (%p2943) target = $region92
      $region91: #{tpu_custom_call.1} parent=5 // pred_region
        %s2946 = ssub.s32 %s26, 2
        // Predicated region
        $region93: #{tpu_custom_call.1} parent=91 // pred_check
          %p2947 = pneg %p275
        $region94: #{tpu_custom_call.1} parent=91 // pred_check_branch
          %2949 = sbr.rel (%p2947) target = $region96
        $region95: #{tpu_custom_call.1} parent=91 // pred_region
          %s2950 = sand.u32 %s260, 1
          %s2951 = scalar_lea.sflag [#allocation5], %s2950
          %s2952 = sand.u32 %s260, 1
          %s2953 = smul.addr %s2952, 256
          %s2954 = scalar_lea.vmem [#allocation14], %s2953
          %2956 = dma.done %s2951, 4096
        $region96: #{tpu_custom_call.1} parent=91 // pred_fallthru
          _
      $region92: #{tpu_custom_call.1} parent=5 // pred_fallthru
        _
    $region6: #{tpu_custom_call.1} parent=1 // loop_footer
      %s30 = sadd.s32 1, %s26
    $region7: #{tpu_custom_call.1} parent=1 // loop_footer_branch
      %25 = sbr.rel target = $region3
    $region8: #{tpu_custom_call.1} parent=1 // loop_exit
      _
    %2957 = vsyncpa [#allocation4], 1
    %s2958 = scalar_lea.sflag [#allocation4], 1
    %2959 = vsyncpa %s2958, 1
    %2960 = vsyncpa [#allocation7], 1
    %s2961 = scalar_lea.sflag [#allocation7], 1
    %2962 = vsyncpa %s2961, 1
    %2963 = vsyncpa [#allocation10], 1
    %2964 = vsyncpa [#allocation13], 1
    %2965 = vsyncpa [#allocation5], 1
    %s2966 = scalar_lea.sflag [#allocation5], 1
    %2967 = vsyncpa %s2966, 1

</llo_original>
